<compile_context>
chip_gen: v7x
topology: tpu7x:2x2x1
jax: 0.10.0
libtpu: 0.0.40
codegen_flags: <defaults>
</compile_context>

<pallas_src>
import math

import jax
import jax.numpy as jnp
from jax.experimental import pallas as pl
from jax.experimental.pallas import tpu as pltpu

IN_F, HID_F, OUT_F = 16, 64, 2
PACK = 8                          # original rows packed into the 128-lane axis
PACKED_IN = PACK * IN_F           # 128  input lanes per packed row
PACKED_HID = PACK * HID_F         # 512  hidden lanes per packed row
PACKED_OUT = PACK * OUT_F         # 16   output lanes per packed row
OUT_LANES = PACK * PACKED_OUT     # 128  lane-dense output row = 64 original rows
SUPER = PACK * PACK               # 64   original rows per lane-dense output row
TILE_RO_MAX = 512                 # lane-dense out rows / grid step
                                  #   = 4096 packed rows = 32768 original rows
                                  #   ~2.25 MiB HBM traffic, ~6-7 MiB VMEM / step


def _mlp_kernel(x_ref, w1_ref, b1_ref, w2_ref, b2_ref, o_ref):
    """Linear(16->64) + ReLU + Linear(64->2) on lane-packed rows."""
    tile_ro = o_ref.shape[0]
    w1 = w1_ref[...]              # (128, 512) bf16, kron(I8, W1)  (resident)
    b1 = b1_ref[...]              # (1, 512)   f32
    w2 = w2_ref[...]              # (512, 16)  bf16, kron(I8, W2)
    b2 = b2_ref[...]              # (1, 16)    f32
    # Static 8-way unroll: packed rows j, j+8, j+16, ... are pulled with a
    # sublane-strided load so the results for 64 consecutive original rows land
    # side-by-side in the 128 output lanes (lane-dense out block; the HBM flat
    # order then equals the row-major (M, 2) result).
    for j in range(PACK):
        xj = x_ref[pl.ds(j, tile_ro, stride=PACK), :].astype(jnp.bfloat16)
        hj = jnp.dot(xj, w1, preferred_element_type=jnp.float32)        # MXU bf16, f32 acc
        hj = jnp.maximum(hj + b1, 0.0).astype(jnp.bfloat16)             # bias + ReLU (f32 VPU)
        yj = jnp.dot(hj, w2, preferred_element_type=jnp.float32) + b2   # (tile_ro, 16) f32
        o_ref[:, j * PACKED_OUT:(j + 1) * PACKED_OUT] = yj.astype(o_ref.dtype)


def _choose_tile_ro(ro):
    """Pick the lane-dense output row tile.

    Keeps the out-block sublane count a multiple of 8 (or the full extent),
    caps per-step VMEM, and prefers >=2 balanced blocks so the "parallel" grid
    axis can split across v7x's two TensorCores.
    """
    half = ((pl.cdiv(ro, 2) + PACK - 1) // PACK) * PACK
    if half < ro:                       # splitting actually yields >= 2 blocks
        return min(TILE_RO_MAX, half)
    return min(TILE_RO_MAX, ro)


def pack_params(w1, b1, w2, b2):
    """One-time expansion of the MLP parameters to the lane-packed layout."""
    eye = jnp.eye(PACK, dtype=jnp.float32)
    w1b = jnp.kron(eye, w1.astype(jnp.float32)).astype(jnp.bfloat16)       # (128, 512)
    w2b = jnp.kron(eye, w2.astype(jnp.float32)).astype(jnp.bfloat16)       # (512, 16)
    b1b = jnp.tile(b1.reshape(1, HID_F).astype(jnp.float32), (1, PACK))    # (1, 512)
    b2b = jnp.tile(b2.reshape(1, OUT_F).astype(jnp.float32), (1, PACK))    # (1, 16)
    return w1b, b1b, w2b, b2b


def basic_conv3d_forward(x, packed_params):
    """x: (..., 16) float32 -> (..., 2) float32, using pre-packed params."""
    w1b, b1b, w2b, b2b = packed_params
    lead = x.shape[:-1]
    m = math.prod(lead)
    x2 = x.reshape(m, IN_F).astype(jnp.float32)

    # Lane packing needs m % 64 == 0 (8 rows -> 128 input lanes, 64 rows -> 128
    # output lanes).  Pad by < 64 rows only when needed (no-op in common case).
    # TODO(synk): a tiny epilogue kernel would avoid this copy for huge ragged m.
    mp = pl.cdiv(m, SUPER) * SUPER
    if mp != m:
        x2 = jnp.pad(x2, ((0, mp - m), (0, 0)))

    r = mp // PACK                      # packed rows (128 input lanes each)
    ro = mp // SUPER                    # lane-dense output rows (128 lanes each)
    xp = x2.reshape(r, PACKED_IN)       # contiguous -> free reshape

    tile_ro = _choose_tile_ro(ro)
    tile_r = tile_ro * PACK
    grid = (pl.cdiv(ro, tile_ro),)      # ragged last block masked by Pallas

    out = pl.pallas_call(
        _mlp_kernel,
        out_shape=jax.ShapeDtypeStruct((ro, OUT_LANES), jnp.float32),
        grid_spec=pltpu.PrefetchScalarGridSpec(
            num_scalar_prefetch=0,
            grid=grid,
            in_specs=[
                pl.BlockSpec((tile_r, PACKED_IN), lambda i: (i, 0)),       # x tile
                pl.BlockSpec((PACKED_IN, PACKED_HID), lambda i: (0, 0)),   # W1 (resident)
                pl.BlockSpec((1, PACKED_HID), lambda i: (0, 0)),           # b1
                pl.BlockSpec((PACKED_HID, PACKED_OUT), lambda i: (0, 0)),  # W2
                pl.BlockSpec((1, PACKED_OUT), lambda i: (0, 0)),           # b2
            ],
            out_specs=pl.BlockSpec((tile_ro, OUT_LANES), lambda i: (i, 0)),
        ),
        compiler_params=pltpu.CompilerParams(
            dimension_semantics=("parallel",),
            vmem_limit_bytes=32 * 1024 * 1024,   # headroom incl. v5e's 16 MiB default
        ),
    )(xp, w1b, b1b, w2b, b2b)

    y = out.reshape(mp, OUT_F)          # flat order matches row-major exactly
    if mp != m:
        y = y[:m]
    return y.reshape(*lead, OUT_F)


def init_params(key):
    """Deterministic init mimicking torch.nn.Linear default (U(+/- 1/sqrt(fan_in)))."""
    k1, k2, k3, k4 = jax.random.split(key, 4)
    lim1 = 1.0 / (IN_F ** 0.5)
    lim2 = 1.0 / (HID_F ** 0.5)
    w1 = jax.random.uniform(k1, (IN_F, HID_F), jnp.float32, -lim1, lim1)
    b1 = jax.random.uniform(k2, (1, HID_F), jnp.float32, -lim1, lim1)
    w2 = jax.random.uniform(k3, (HID_F, OUT_F), jnp.float32, -lim2, lim2)
    b2 = jax.random.uniform(k4, (1, OUT_F), jnp.float32, -lim2, lim2)
    return w1, b1, w2, b2


if __name__ == "__main__":
    key = jax.random.PRNGKey(0)
    kx, kp = jax.random.split(key)
    # Small input consistent with the module's forward: last dim must be 16.
    x = jax.random.normal(kx, (2, 4, 16, IN_F), jnp.float32)
    w1, b1, w2, b2 = init_params(kp)
    packed = pack_params(w1, b1, w2, b2)       # hoisted: built once, reused

    fwd = jax.jit(basic_conv3d_forward)
    out = jax.block_until_ready(fwd(x, packed))

    # Pure-JAX f32 reference (kernel runs the MXU in bf16 with f32 accumulation,
    # so the tolerance is loosened accordingly).
    ref = jnp.maximum(x @ w1 + b1, 0.0) @ w2 + b2
    assert out.shape == (2, 4, 16, OUT_F)
    err = float(jnp.max(jnp.abs(out - ref)))
    assert jnp.allclose(out, ref, atol=2e-2, rtol=2e-2), err
    print("KERNEL_OK")
</pallas_src>

<mosaic_0001>
module attributes {stable_mosaic.version = 11 : i64} {
  func.func @_mlp_kernel(%arg0: i32, %arg1: memref<16x128xf32, #tpu.memory_space<vmem>>, %arg2: memref<128x512xbf16, #tpu.memory_space<vmem>>, %arg3: memref<1x512xf32, #tpu.memory_space<vmem>>, %arg4: memref<512x16xbf16, #tpu.memory_space<vmem>>, %arg5: memref<1x16xf32, #tpu.memory_space<vmem>>, %arg6: memref<2x128xf32, #tpu.memory_space<vmem>>) attributes {dimension_semantics = [#tpu.dimension_semantics<parallel>], iteration_bounds = array<i64: 1>, scalar_prefetch = 0 : i64, scratch_operands = 0 : i64, tpu.core_type = #tpu.core_type<tc>, window_params = [{transform_indices = @transform_0, window_bounds = array<i64: 16, 128>}, {pipeline_mode = #tpu.pipeline_mode<synchronous>, transform_indices = @transform_1, window_bounds = array<i64: 128, 512>}, {pipeline_mode = #tpu.pipeline_mode<synchronous>, transform_indices = @transform_2, window_bounds = array<i64: 1, 512>}, {pipeline_mode = #tpu.pipeline_mode<synchronous>, transform_indices = @transform_3, window_bounds = array<i64: 512, 16>}, {pipeline_mode = #tpu.pipeline_mode<synchronous>, transform_indices = @transform_4, window_bounds = array<i64: 1, 16>}, {transform_indices = @transform_5, window_bounds = array<i64: 2, 128>}]} {
    %c0 = arith.constant 0 : index
    %c0_0 = arith.constant 0 : index
    %0 = vector.load %arg2[%c0, %c0_0] : memref<128x512xbf16, #tpu.memory_space<vmem>>, vector<128x512xbf16>
    %c0_1 = arith.constant 0 : index
    %c0_2 = arith.constant 0 : index
    %1 = vector.load %arg3[%c0_1, %c0_2] : memref<1x512xf32, #tpu.memory_space<vmem>>, vector<1x512xf32>
    %c0_3 = arith.constant 0 : index
    %c0_4 = arith.constant 0 : index
    %2 = vector.load %arg4[%c0_3, %c0_4] : memref<512x16xbf16, #tpu.memory_space<vmem>>, vector<512x16xbf16>
    %c0_5 = arith.constant 0 : index
    %c0_6 = arith.constant 0 : index
    %3 = vector.load %arg5[%c0_5, %c0_6] : memref<1x16xf32, #tpu.memory_space<vmem>>, vector<1x16xf32>
    %c0_7 = arith.constant 0 : index
    %c0_8 = arith.constant 0 : index
    %4 = tpu.strided_load %arg1[%c0_7, %c0_8] {strides = array<i32: 8, 1>} : memref<16x128xf32, #tpu.memory_space<vmem>>, vector<2x128xf32>
    %5 = arith.truncf %4 : vector<2x128xf32> to vector<2x128xbf16>
    %cst = arith.constant dense<0.000000e+00> : vector<2x512xf32>
    %6 = tpu.matmul %5, %0, %cst {dimension_numbers = #tpu.dot_dimension_numbers<[1], [0], [0], [1], [0, 0, 1, 1], [], []>} : vector<2x128xbf16>, vector<128x512xbf16>, vector<2x512xf32> -> vector<2x512xf32>
    %7 = vector.broadcast %1 : vector<1x512xf32> to vector<2x512xf32>
    %8 = arith.addf %6, %7 : vector<2x512xf32>
    %cst_9 = arith.constant 0.000000e+00 : f32
    %9 = vector.broadcast %cst_9 : f32 to vector<2x512xf32>
    %10 = arith.maximumf %8, %9 : vector<2x512xf32>
    %11 = arith.truncf %10 : vector<2x512xf32> to vector<2x512xbf16>
    %cst_10 = arith.constant dense<0.000000e+00> : vector<2x16xf32>
    %12 = tpu.matmul %11, %2, %cst_10 {dimension_numbers = #tpu.dot_dimension_numbers<[1], [0], [0], [1], [0, 0, 1, 1], [], []>} : vector<2x512xbf16>, vector<512x16xbf16>, vector<2x16xf32> -> vector<2x16xf32>
    %13 = vector.broadcast %3 : vector<1x16xf32> to vector<2x16xf32>
    %14 = arith.addf %12, %13 : vector<2x16xf32>
    %c0_11 = arith.constant 0 : index
    %c0_12 = arith.constant 0 : index
    %15 = vector.load %arg6[%c0_11, %c0_12] : memref<2x128xf32, #tpu.memory_space<vmem>>, vector<2x16xf32>
    tpu.vector_store %arg6[%c0_11, %c0_12], %14 {strides = array<i32>} : memref<2x128xf32, #tpu.memory_space<vmem>>, vector<2x16xf32>,
    %c1 = arith.constant 1 : index
    %c0_13 = arith.constant 0 : index
    %16 = tpu.strided_load %arg1[%c1, %c0_13] {strides = array<i32: 8, 1>} : memref<16x128xf32, #tpu.memory_space<vmem>>, vector<2x128xf32>
    %17 = arith.truncf %16 : vector<2x128xf32> to vector<2x128xbf16>
    %cst_14 = arith.constant dense<0.000000e+00> : vector<2x512xf32>
    %18 = tpu.matmul %17, %0, %cst_14 {dimension_numbers = #tpu.dot_dimension_numbers<[1], [0], [0], [1], [0, 0, 1, 1], [], []>} : vector<2x128xbf16>, vector<128x512xbf16>, vector<2x512xf32> -> vector<2x512xf32>
    %19 = vector.broadcast %1 : vector<1x512xf32> to vector<2x512xf32>
    %20 = arith.addf %18, %19 : vector<2x512xf32>
    %cst_15 = arith.constant 0.000000e+00 : f32
    %21 = vector.broadcast %cst_15 : f32 to vector<2x512xf32>
    %22 = arith.maximumf %20, %21 : vector<2x512xf32>
    %23 = arith.truncf %22 : vector<2x512xf32> to vector<2x512xbf16>
    %cst_16 = arith.constant dense<0.000000e+00> : vector<2x16xf32>
    %24 = tpu.matmul %23, %2, %cst_16 {dimension_numbers = #tpu.dot_dimension_numbers<[1], [0], [0], [1], [0, 0, 1, 1], [], []>} : vector<2x512xbf16>, vector<512x16xbf16>, vector<2x16xf32> -> vector<2x16xf32>
    %25 = vector.broadcast %3 : vector<1x16xf32> to vector<2x16xf32>
    %26 = arith.addf %24, %25 : vector<2x16xf32>
    %c0_17 = arith.constant 0 : index
    %c16 = arith.constant 16 : index
    %27 = vector.load %arg6[%c0_17, %c16] : memref<2x128xf32, #tpu.memory_space<vmem>>, vector<2x16xf32>
    tpu.vector_store %arg6[%c0_17, %c16], %26 {strides = array<i32>} : memref<2x128xf32, #tpu.memory_space<vmem>>, vector<2x16xf32>,
    %c2 = arith.constant 2 : index
    %c0_18 = arith.constant 0 : index
    %28 = tpu.strided_load %arg1[%c2, %c0_18] {strides = array<i32: 8, 1>} : memref<16x128xf32, #tpu.memory_space<vmem>>, vector<2x128xf32>
    %29 = arith.truncf %28 : vector<2x128xf32> to vector<2x128xbf16>
    %cst_19 = arith.constant dense<0.000000e+00> : vector<2x512xf32>
    %30 = tpu.matmul %29, %0, %cst_19 {dimension_numbers = #tpu.dot_dimension_numbers<[1], [0], [0], [1], [0, 0, 1, 1], [], []>} : vector<2x128xbf16>, vector<128x512xbf16>, vector<2x512xf32> -> vector<2x512xf32>
    %31 = vector.broadcast %1 : vector<1x512xf32> to vector<2x512xf32>
    %32 = arith.addf %30, %31 : vector<2x512xf32>
    %cst_20 = arith.constant 0.000000e+00 : f32
    %33 = vector.broadcast %cst_20 : f32 to vector<2x512xf32>
    %34 = arith.maximumf %32, %33 : vector<2x512xf32>
    %35 = arith.truncf %34 : vector<2x512xf32> to vector<2x512xbf16>
    %cst_21 = arith.constant dense<0.000000e+00> : vector<2x16xf32>
    %36 = tpu.matmul %35, %2, %cst_21 {dimension_numbers = #tpu.dot_dimension_numbers<[1], [0], [0], [1], [0, 0, 1, 1], [], []>} : vector<2x512xbf16>, vector<512x16xbf16>, vector<2x16xf32> -> vector<2x16xf32>
    %37 = vector.broadcast %3 : vector<1x16xf32> to vector<2x16xf32>
    %38 = arith.addf %36, %37 : vector<2x16xf32>
    %c0_22 = arith.constant 0 : index
    %c32 = arith.constant 32 : index
    %39 = vector.load %arg6[%c0_22, %c32] : memref<2x128xf32, #tpu.memory_space<vmem>>, vector<2x16xf32>
    tpu.vector_store %arg6[%c0_22, %c32], %38 {strides = array<i32>} : memref<2x128xf32, #tpu.memory_space<vmem>>, vector<2x16xf32>,
    %c3 = arith.constant 3 : index
    %c0_23 = arith.constant 0 : index
    %40 = tpu.strided_load %arg1[%c3, %c0_23] {strides = array<i32: 8, 1>} : memref<16x128xf32, #tpu.memory_space<vmem>>, vector<2x128xf32>
    %41 = arith.truncf %40 : vector<2x128xf32> to vector<2x128xbf16>
    %cst_24 = arith.constant dense<0.000000e+00> : vector<2x512xf32>
    %42 = tpu.matmul %41, %0, %cst_24 {dimension_numbers = #tpu.dot_dimension_numbers<[1], [0], [0], [1], [0, 0, 1, 1], [], []>} : vector<2x128xbf16>, vector<128x512xbf16>, vector<2x512xf32> -> vector<2x512xf32>
    %43 = vector.broadcast %1 : vector<1x512xf32> to vector<2x512xf32>
    %44 = arith.addf %42, %43 : vector<2x512xf32>
    %cst_25 = arith.constant 0.000000e+00 : f32
    %45 = vector.broadcast %cst_25 : f32 to vector<2x512xf32>
    %46 = arith.maximumf %44, %45 : vector<2x512xf32>
    %47 = arith.truncf %46 : vector<2x512xf32> to vector<2x512xbf16>
    %cst_26 = arith.constant dense<0.000000e+00> : vector<2x16xf32>
    %48 = tpu.matmul %47, %2, %cst_26 {dimension_numbers = #tpu.dot_dimension_numbers<[1], [0], [0], [1], [0, 0, 1, 1], [], []>} : vector<2x512xbf16>, vector<512x16xbf16>, vector<2x16xf32> -> vector<2x16xf32>
    %49 = vector.broadcast %3 : vector<1x16xf32> to vector<2x16xf32>
    %50 = arith.addf %48, %49 : vector<2x16xf32>
    %c0_27 = arith.constant 0 : index
    %c48 = arith.constant 48 : index
    %51 = vector.load %arg6[%c0_27, %c48] : memref<2x128xf32, #tpu.memory_space<vmem>>, vector<2x16xf32>
    tpu.vector_store %arg6[%c0_27, %c48], %50 {strides = array<i32>} : memref<2x128xf32, #tpu.memory_space<vmem>>, vector<2x16xf32>,
    %c4 = arith.constant 4 : index
    %c0_28 = arith.constant 0 : index
    %52 = tpu.strided_load %arg1[%c4, %c0_28] {strides = array<i32: 8, 1>} : memref<16x128xf32, #tpu.memory_space<vmem>>, vector<2x128xf32>
    %53 = arith.truncf %52 : vector<2x128xf32> to vector<2x128xbf16>
    %cst_29 = arith.constant dense<0.000000e+00> : vector<2x512xf32>
    %54 = tpu.matmul %53, %0, %cst_29 {dimension_numbers = #tpu.dot_dimension_numbers<[1], [0], [0], [1], [0, 0, 1, 1], [], []>} : vector<2x128xbf16>, vector<128x512xbf16>, vector<2x512xf32> -> vector<2x512xf32>
    %55 = vector.broadcast %1 : vector<1x512xf32> to vector<2x512xf32>
    %56 = arith.addf %54, %55 : vector<2x512xf32>
    %cst_30 = arith.constant 0.000000e+00 : f32
    %57 = vector.broadcast %cst_30 : f32 to vector<2x512xf32>
    %58 = arith.maximumf %56, %57 : vector<2x512xf32>
    %59 = arith.truncf %58 : vector<2x512xf32> to vector<2x512xbf16>
    %cst_31 = arith.constant dense<0.000000e+00> : vector<2x16xf32>
    %60 = tpu.matmul %59, %2, %cst_31 {dimension_numbers = #tpu.dot_dimension_numbers<[1], [0], [0], [1], [0, 0, 1, 1], [], []>} : vector<2x512xbf16>, vector<512x16xbf16>, vector<2x16xf32> -> vector<2x16xf32>
    %61 = vector.broadcast %3 : vector<1x16xf32> to vector<2x16xf32>
    %62 = arith.addf %60, %61 : vector<2x16xf32>
    %c0_32 = arith.constant 0 : index
    %c64 = arith.constant 64 : index
    %63 = vector.load %arg6[%c0_32, %c64] : memref<2x128xf32, #tpu.memory_space<vmem>>, vector<2x16xf32>
    tpu.vector_store %arg6[%c0_32, %c64], %62 {strides = array<i32>} : memref<2x128xf32, #tpu.memory_space<vmem>>, vector<2x16xf32>,
    %c5 = arith.constant 5 : index
    %c0_33 = arith.constant 0 : index
    %64 = tpu.strided_load %arg1[%c5, %c0_33] {strides = array<i32: 8, 1>} : memref<16x128xf32, #tpu.memory_space<vmem>>, vector<2x128xf32>
    %65 = arith.truncf %64 : vector<2x128xf32> to vector<2x128xbf16>
    %cst_34 = arith.constant dense<0.000000e+00> : vector<2x512xf32>
    %66 = tpu.matmul %65, %0, %cst_34 {dimension_numbers = #tpu.dot_dimension_numbers<[1], [0], [0], [1], [0, 0, 1, 1], [], []>} : vector<2x128xbf16>, vector<128x512xbf16>, vector<2x512xf32> -> vector<2x512xf32>
    %67 = vector.broadcast %1 : vector<1x512xf32> to vector<2x512xf32>
    %68 = arith.addf %66, %67 : vector<2x512xf32>
    %cst_35 = arith.constant 0.000000e+00 : f32
    %69 = vector.broadcast %cst_35 : f32 to vector<2x512xf32>
    %70 = arith.maximumf %68, %69 : vector<2x512xf32>
    %71 = arith.truncf %70 : vector<2x512xf32> to vector<2x512xbf16>
    %cst_36 = arith.constant dense<0.000000e+00> : vector<2x16xf32>
    %72 = tpu.matmul %71, %2, %cst_36 {dimension_numbers = #tpu.dot_dimension_numbers<[1], [0], [0], [1], [0, 0, 1, 1], [], []>} : vector<2x512xbf16>, vector<512x16xbf16>, vector<2x16xf32> -> vector<2x16xf32>
    %73 = vector.broadcast %3 : vector<1x16xf32> to vector<2x16xf32>
    %74 = arith.addf %72, %73 : vector<2x16xf32>
    %c0_37 = arith.constant 0 : index
    %c80 = arith.constant 80 : index
    %75 = vector.load %arg6[%c0_37, %c80] : memref<2x128xf32, #tpu.memory_space<vmem>>, vector<2x16xf32>
    tpu.vector_store %arg6[%c0_37, %c80], %74 {strides = array<i32>} : memref<2x128xf32, #tpu.memory_space<vmem>>, vector<2x16xf32>,
    %c6 = arith.constant 6 : index
    %c0_38 = arith.constant 0 : index
    %76 = tpu.strided_load %arg1[%c6, %c0_38] {strides = array<i32: 8, 1>} : memref<16x128xf32, #tpu.memory_space<vmem>>, vector<2x128xf32>
    %77 = arith.truncf %76 : vector<2x128xf32> to vector<2x128xbf16>
    %cst_39 = arith.constant dense<0.000000e+00> : vector<2x512xf32>
    %78 = tpu.matmul %77, %0, %cst_39 {dimension_numbers = #tpu.dot_dimension_numbers<[1], [0], [0], [1], [0, 0, 1, 1], [], []>} : vector<2x128xbf16>, vector<128x512xbf16>, vector<2x512xf32> -> vector<2x512xf32>
    %79 = vector.broadcast %1 : vector<1x512xf32> to vector<2x512xf32>
    %80 = arith.addf %78, %79 : vector<2x512xf32>
    %cst_40 = arith.constant 0.000000e+00 : f32
    %81 = vector.broadcast %cst_40 : f32 to vector<2x512xf32>
    %82 = arith.maximumf %80, %81 : vector<2x512xf32>
    %83 = arith.truncf %82 : vector<2x512xf32> to vector<2x512xbf16>
    %cst_41 = arith.constant dense<0.000000e+00> : vector<2x16xf32>
    %84 = tpu.matmul %83, %2, %cst_41 {dimension_numbers = #tpu.dot_dimension_numbers<[1], [0], [0], [1], [0, 0, 1, 1], [], []>} : vector<2x512xbf16>, vector<512x16xbf16>, vector<2x16xf32> -> vector<2x16xf32>
    %85 = vector.broadcast %3 : vector<1x16xf32> to vector<2x16xf32>
    %86 = arith.addf %84, %85 : vector<2x16xf32>
    %c0_42 = arith.constant 0 : index
    %c96 = arith.constant 96 : index
    %87 = vector.load %arg6[%c0_42, %c96] : memref<2x128xf32, #tpu.memory_space<vmem>>, vector<2x16xf32>
    tpu.vector_store %arg6[%c0_42, %c96], %86 {strides = array<i32>} : memref<2x128xf32, #tpu.memory_space<vmem>>, vector<2x16xf32>,
    %c7 = arith.constant 7 : index
    %c0_43 = arith.constant 0 : index
    %88 = tpu.strided_load %arg1[%c7, %c0_43] {strides = array<i32: 8, 1>} : memref<16x128xf32, #tpu.memory_space<vmem>>, vector<2x128xf32>
    %89 = arith.truncf %88 : vector<2x128xf32> to vector<2x128xbf16>
    %cst_44 = arith.constant dense<0.000000e+00> : vector<2x512xf32>
    %90 = tpu.matmul %89, %0, %cst_44 {dimension_numbers = #tpu.dot_dimension_numbers<[1], [0], [0], [1], [0, 0, 1, 1], [], []>} : vector<2x128xbf16>, vector<128x512xbf16>, vector<2x512xf32> -> vector<2x512xf32>
    %91 = vector.broadcast %1 : vector<1x512xf32> to vector<2x512xf32>
    %92 = arith.addf %90, %91 : vector<2x512xf32>
    %cst_45 = arith.constant 0.000000e+00 : f32
    %93 = vector.broadcast %cst_45 : f32 to vector<2x512xf32>
    %94 = arith.maximumf %92, %93 : vector<2x512xf32>
    %95 = arith.truncf %94 : vector<2x512xf32> to vector<2x512xbf16>
    %cst_46 = arith.constant dense<0.000000e+00> : vector<2x16xf32>
    %96 = tpu.matmul %95, %2, %cst_46 {dimension_numbers = #tpu.dot_dimension_numbers<[1], [0], [0], [1], [0, 0, 1, 1], [], []>} : vector<2x512xbf16>, vector<512x16xbf16>, vector<2x16xf32> -> vector<2x16xf32>
    %97 = vector.broadcast %3 : vector<1x16xf32> to vector<2x16xf32>
    %98 = arith.addf %96, %97 : vector<2x16xf32>
    %c0_47 = arith.constant 0 : index
    %c112 = arith.constant 112 : index
    %99 = vector.load %arg6[%c0_47, %c112] : memref<2x128xf32, #tpu.memory_space<vmem>>, vector<2x16xf32>
    tpu.vector_store %arg6[%c0_47, %c112], %98 {strides = array<i32>} : memref<2x128xf32, #tpu.memory_space<vmem>>, vector<2x16xf32>,
    return
  }
  func.func @transform_0(%arg0: i32) -> (i32, i32) {
    %c0_i32 = arith.constant 0 : i32
    %c0_i32_0 = arith.constant 0 : i32
    return %arg0, %c0_i32 : i32, i32
  }
  func.func @transform_1(%arg0: i32) -> (i32, i32) {
    %c0_i32 = arith.constant 0 : i32
    %c0_i32_0 = arith.constant 0 : i32
    %c0_i32_1 = arith.constant 0 : i32
    return %c0_i32, %c0_i32_0 : i32, i32
  }
  func.func @transform_2(%arg0: i32) -> (i32, i32) {
    %c0_i32 = arith.constant 0 : i32
    %c0_i32_0 = arith.constant 0 : i32
    %c0_i32_1 = arith.constant 0 : i32
    return %c0_i32, %c0_i32_0 : i32, i32
  }
  func.func @transform_3(%arg0: i32) -> (i32, i32) {
    %c0_i32 = arith.constant 0 : i32
    %c0_i32_0 = arith.constant 0 : i32
    %c0_i32_1 = arith.constant 0 : i32
    return %c0_i32, %c0_i32_0 : i32, i32
  }
  func.func @transform_4(%arg0: i32) -> (i32, i32) {
    %c0_i32 = arith.constant 0 : i32
    %c0_i32_0 = arith.constant 0 : i32
    %c0_i32_1 = arith.constant 0 : i32
    return %c0_i32, %c0_i32_0 : i32, i32
  }
  func.func @transform_5(%arg0: i32) -> (i32, i32) {
    %c0_i32 = arith.constant 0 : i32
    %c0_i32_0 = arith.constant 0 : i32
    return %arg0, %c0_i32 : i32, i32
  }
}

</mosaic_0001>

<llo_original>
// kernel: basic_conv3d_forward.1
$region0: #{basic_conv3d_forward.1}
  #allocation0 [shape = 'u32[]', space=smem, size = 0x4, offset = 0x4, fixed_abs, tag = 'smem constant byte address 0x4 - core index']
  #allocation1 [shape = 'u32[144,128]{1,0:T(1,128)}', space=vmem, size = 0x12000, scoped, tag = 'internal scratch']
  %s0 = inlined_call_operand.vmem [shape: f32[16,128], index: 0, kind: input, shape index: {}]
  %s1 = inlined_call_operand.vmem [shape: bf16[128,512], index: 1, kind: input, shape index: {}]
  %s2 = inlined_call_operand.vmem [shape: f32[1,512], index: 2, kind: input, shape index: {}]
  %s3 = inlined_call_operand.vmem [shape: bf16[512,16], index: 3, kind: input, shape index: {}]
  %s4 = inlined_call_operand.vmem [shape: f32[1,16], index: 4, kind: input, shape index: {}]
  %s5 = inlined_call_operand.vmem [shape: f32[2,128], index: 5, kind: output, shape index: {}]
  %s6 = sld [smem:[#allocation0]]
  $region30: #{basic_conv3d_forward.1} parent=0
    _
  %s8 = ssub.s32 1, %s6
  %s9 = scalar_select 0, %s8, %s6
  // Predicated region
  $region2: #{basic_conv3d_forward.1} parent=0 // pred_check
    _
  $region3: #{basic_conv3d_forward.1} parent=0 // pred_check_branch
    %11 = sbr.rel (0) target = $region5
  $region4: #{basic_conv3d_forward.1} parent=0 // pred_region
    _
  $region5: #{basic_conv3d_forward.1} parent=0 // pred_fallthru
    _
  // Predicated region
  $region6: #{basic_conv3d_forward.1} parent=0 // pred_check
    _
  $region7: #{basic_conv3d_forward.1} parent=0 // pred_check_branch
    %13 = sbr.rel (0) target = $region9
  $region8: #{basic_conv3d_forward.1} parent=0 // pred_region
    _
  $region9: #{basic_conv3d_forward.1} parent=0 // pred_fallthru
    _
  // Predicated region
  $region10: #{basic_conv3d_forward.1} parent=0 // pred_check
    _
  $region11: #{basic_conv3d_forward.1} parent=0 // pred_check_branch
    %15 = sbr.rel (0) target = $region13
  $region12: #{basic_conv3d_forward.1} parent=0 // pred_region
    _
  $region13: #{basic_conv3d_forward.1} parent=0 // pred_fallthru
    _
  // Predicated region
  $region14: #{basic_conv3d_forward.1} parent=0 // pred_check
    _
  $region15: #{basic_conv3d_forward.1} parent=0 // pred_check_branch
    %17 = sbr.rel (0) target = $region17
  $region16: #{basic_conv3d_forward.1} parent=0 // pred_region
    _
  $region17: #{basic_conv3d_forward.1} parent=0 // pred_fallthru
    _
  // Predicated region
  $region18: #{basic_conv3d_forward.1} parent=0 // pred_check
    _
  $region19: #{basic_conv3d_forward.1} parent=0 // pred_check_branch
    %19 = sbr.rel (0) target = $region21
  $region20: #{basic_conv3d_forward.1} parent=0 // pred_region
    _
  $region21: #{basic_conv3d_forward.1} parent=0 // pred_fallthru
    _
  %v21 = vld [vmem:[%s1] sm:$0xff]
  %v22 = vld [vmem:[%s1 + $0x8] sm:$0xff]
  %v23 = vld [vmem:[%s1 + $0x10] sm:$0xff]
  %v24 = vld [vmem:[%s1 + $0x18] sm:$0xff]
  %v25 = vld [vmem:[%s1 + $0x20] sm:$0xff]
  %v26 = vld [vmem:[%s1 + $0x28] sm:$0xff]
  %v27 = vld [vmem:[%s1 + $0x30] sm:$0xff]
  %v28 = vld [vmem:[%s1 + $0x38] sm:$0xff]
  %v29 = vld [vmem:[%s1 + $0x40] sm:$0xff]
  %v30 = vld [vmem:[%s1 + $0x48] sm:$0xff]
  %v31 = vld [vmem:[%s1 + $0x50] sm:$0xff]
  %v32 = vld [vmem:[%s1 + $0x58] sm:$0xff]
  %v33 = vld [vmem:[%s1 + $0x60] sm:$0xff]
  %v34 = vld [vmem:[%s1 + $0x68] sm:$0xff]
  %v35 = vld [vmem:[%s1 + $0x70] sm:$0xff]
  %v36 = vld [vmem:[%s1 + $0x78] sm:$0xff]
  %v37 = vld [vmem:[%s1 + $0x80] sm:$0xff]
  %v38 = vld [vmem:[%s1 + $0x88] sm:$0xff]
  %v39 = vld [vmem:[%s1 + $0x90] sm:$0xff]
  %v40 = vld [vmem:[%s1 + $0x98] sm:$0xff]
  %v41 = vld [vmem:[%s1 + $0xa0] sm:$0xff]
  %v42 = vld [vmem:[%s1 + $0xa8] sm:$0xff]
  %v43 = vld [vmem:[%s1 + $0xb0] sm:$0xff]
  %v44 = vld [vmem:[%s1 + $0xb8] sm:$0xff]
  %v45 = vld [vmem:[%s1 + $0xc0] sm:$0xff]
  %v46 = vld [vmem:[%s1 + $0xc8] sm:$0xff]
  %v47 = vld [vmem:[%s1 + $0xd0] sm:$0xff]
  %v48 = vld [vmem:[%s1 + $0xd8] sm:$0xff]
  %v49 = vld [vmem:[%s1 + $0xe0] sm:$0xff]
  %v50 = vld [vmem:[%s1 + $0xe8] sm:$0xff]
  %v51 = vld [vmem:[%s1 + $0xf0] sm:$0xff]
  %v52 = vld [vmem:[%s1 + $0xf8] sm:$0xff]
  %v53 = vld [vmem:[%s2] sm:$0xf]
  %v54 = vld [vmem:[%s3] sm:$0xf]
  %v55 = vld [vmem:[%s3 + $0x4] sm:$0xf]
  %v56 = vld [vmem:[%s3 + $0x8] sm:$0xf]
  %v57 = vld [vmem:[%s3 + $0xc] sm:$0xf]
  %v58 = vld [vmem:[%s3 + $0x10] sm:$0xf]
  %v59 = vld [vmem:[%s3 + $0x14] sm:$0xf]
  %v60 = vld [vmem:[%s3 + $0x18] sm:$0xf]
  %v61 = vld [vmem:[%s3 + $0x1c] sm:$0xf]
  %v62 = vld [vmem:[%s3 + $0x20] sm:$0xf]
  %v63 = vld [vmem:[%s3 + $0x24] sm:$0xf]
  %v64 = vld [vmem:[%s3 + $0x28] sm:$0xf]
  %v65 = vld [vmem:[%s3 + $0x2c] sm:$0xf]
  %v66 = vld [vmem:[%s3 + $0x30] sm:$0xf]
  %v67 = vld [vmem:[%s3 + $0x34] sm:$0xf]
  %v68 = vld [vmem:[%s3 + $0x38] sm:$0xf]
  %v69 = vld [vmem:[%s3 + $0x3c] sm:$0xf]
  %v70 = vld [vmem:[%s3 + $0x40] sm:$0xf]
  %v71 = vld [vmem:[%s3 + $0x44] sm:$0xf]
  %v72 = vld [vmem:[%s3 + $0x48] sm:$0xf]
  %v73 = vld [vmem:[%s3 + $0x4c] sm:$0xf]
  %v74 = vld [vmem:[%s3 + $0x50] sm:$0xf]
  %v75 = vld [vmem:[%s3 + $0x54] sm:$0xf]
  %v76 = vld [vmem:[%s3 + $0x58] sm:$0xf]
  %v77 = vld [vmem:[%s3 + $0x5c] sm:$0xf]
  %v78 = vld [vmem:[%s3 + $0x60] sm:$0xf]
  %v79 = vld [vmem:[%s3 + $0x64] sm:$0xf]
  %v80 = vld [vmem:[%s3 + $0x68] sm:$0xf]
  %v81 = vld [vmem:[%s3 + $0x6c] sm:$0xf]
  %v82 = vld [vmem:[%s3 + $0x70] sm:$0xf]
  %v83 = vld [vmem:[%s3 + $0x74] sm:$0xf]
  %v84 = vld [vmem:[%s3 + $0x78] sm:$0xf]
  %v85 = vld [vmem:[%s3 + $0x7c] sm:$0xf]
  %v86 = vld [vmem:[%s3 + $0x80] sm:$0xf]
  %v87 = vld [vmem:[%s3 + $0x84] sm:$0xf]
  %v88 = vld [vmem:[%s3 + $0x88] sm:$0xf]
  %v89 = vld [vmem:[%s3 + $0x8c] sm:$0xf]
  %v90 = vld [vmem:[%s3 + $0x90] sm:$0xf]
  %v91 = vld [vmem:[%s3 + $0x94] sm:$0xf]
  %v92 = vld [vmem:[%s3 + $0x98] sm:$0xf]
  %v93 = vld [vmem:[%s3 + $0x9c] sm:$0xf]
  %v94 = vld [vmem:[%s3 + $0xa0] sm:$0xf]
  %v95 = vld [vmem:[%s3 + $0xa4] sm:$0xf]
  %v96 = vld [vmem:[%s3 + $0xa8] sm:$0xf]
  %v97 = vld [vmem:[%s3 + $0xac] sm:$0xf]
  %v98 = vld [vmem:[%s3 + $0xb0] sm:$0xf]
  %v99 = vld [vmem:[%s3 + $0xb4] sm:$0xf]
  %v100 = vld [vmem:[%s3 + $0xb8] sm:$0xf]
  %v101 = vld [vmem:[%s3 + $0xbc] sm:$0xf]
  %v102 = vld [vmem:[%s3 + $0xc0] sm:$0xf]
  %v103 = vld [vmem:[%s3 + $0xc4] sm:$0xf]
  %v104 = vld [vmem:[%s3 + $0xc8] sm:$0xf]
  %v105 = vld [vmem:[%s3 + $0xcc] sm:$0xf]
  %v106 = vld [vmem:[%s3 + $0xd0] sm:$0xf]
  %v107 = vld [vmem:[%s3 + $0xd4] sm:$0xf]
  %v108 = vld [vmem:[%s3 + $0xd8] sm:$0xf]
  %v109 = vld [vmem:[%s3 + $0xdc] sm:$0xf]
  %v110 = vld [vmem:[%s3 + $0xe0] sm:$0xf]
  %v111 = vld [vmem:[%s3 + $0xe4] sm:$0xf]
  %v112 = vld [vmem:[%s3 + $0xe8] sm:$0xf]
  %v113 = vld [vmem:[%s3 + $0xec] sm:$0xf]
  %v114 = vld [vmem:[%s3 + $0xf0] sm:$0xf]
  %v115 = vld [vmem:[%s3 + $0xf4] sm:$0xf]
  %v116 = vld [vmem:[%s3 + $0xf8] sm:$0xf]
  %v117 = vld [vmem:[%s3 + $0xfc] sm:$0xf]
  %v118 = vld [vmem:[%s4] sm:$0x1]
  %v119 = vld [vmem:[%s0] ss:$8 sm:$0x3]
  %v120 = vpack.c.bf16 %v119, %v119
  %v122 = vlaneseq
  %v123 = vshrl.u32 %v122, 7
  %v124 = vsub.s32 0, %v123
  %v125 = vrot.slane %v53, %v124
  %v126 = vlaneseq
  %v127 = vshrl.u32 %v126, 7
  %v128 = vsub.s32 1, %v127
  %v129 = vrot.slane %v53, %v128
  %v130 = vlaneseq
  %v131 = vshrl.u32 %v130, 7
  %v132 = vsub.s32 2, %v131
  %v133 = vrot.slane %v53, %v132
  %v134 = vlaneseq
  %v135 = vshrl.u32 %v134, 7
  %v136 = vsub.s32 3, %v135
  %v137 = vrot.slane %v53, %v136
  %v174 = vunpack.c.l.b16 %v21
  %v175 = vunpack.c.h.b16 %v21
  %v176 = vunpack.c.l.b16 %v22
  %v177 = vunpack.c.h.b16 %v22
  %v178 = vunpack.c.l.b16 %v23
  %v179 = vunpack.c.h.b16 %v23
  %v180 = vunpack.c.l.b16 %v24
  %v181 = vunpack.c.h.b16 %v24
  %v182 = vunpack.c.l.b16 %v25
  %v183 = vunpack.c.h.b16 %v25
  %v184 = vunpack.c.l.b16 %v26
  %v185 = vunpack.c.h.b16 %v26
  %v186 = vunpack.c.l.b16 %v27
  %v187 = vunpack.c.h.b16 %v27
  %v188 = vunpack.c.l.b16 %v28
  %v189 = vunpack.c.h.b16 %v28
  %v190 = vunpack.c.l.b16 %v29
  %v191 = vunpack.c.h.b16 %v29
  %v192 = vunpack.c.l.b16 %v30
  %v193 = vunpack.c.h.b16 %v30
  %v194 = vunpack.c.l.b16 %v31
  %v195 = vunpack.c.h.b16 %v31
  %v196 = vunpack.c.l.b16 %v32
  %v197 = vunpack.c.h.b16 %v32
  %v198 = vunpack.c.l.b16 %v33
  %v199 = vunpack.c.h.b16 %v33
  %v200 = vunpack.c.l.b16 %v34
  %v201 = vunpack.c.h.b16 %v34
  %v202 = vunpack.c.l.b16 %v35
  %v203 = vunpack.c.h.b16 %v35
  %v204 = vunpack.c.l.b16 %v36
  %v205 = vunpack.c.h.b16 %v36
  %v206 = vunpack.c.l.b16 %v37
  %v207 = vunpack.c.h.b16 %v37
  %v208 = vunpack.c.l.b16 %v38
  %v209 = vunpack.c.h.b16 %v38
  %v210 = vunpack.c.l.b16 %v39
  %v211 = vunpack.c.h.b16 %v39
  %v212 = vunpack.c.l.b16 %v40
  %v213 = vunpack.c.h.b16 %v40
  %v214 = vunpack.c.l.b16 %v41
  %v215 = vunpack.c.h.b16 %v41
  %v216 = vunpack.c.l.b16 %v42
  %v217 = vunpack.c.h.b16 %v42
  %v218 = vunpack.c.l.b16 %v43
  %v219 = vunpack.c.h.b16 %v43
  %v220 = vunpack.c.l.b16 %v44
  %v221 = vunpack.c.h.b16 %v44
  %v222 = vunpack.c.l.b16 %v45
  %v223 = vunpack.c.h.b16 %v45
  %v224 = vunpack.c.l.b16 %v46
  %v225 = vunpack.c.h.b16 %v46
  %v226 = vunpack.c.l.b16 %v47
  %v227 = vunpack.c.h.b16 %v47
  %v228 = vunpack.c.l.b16 %v48
  %v229 = vunpack.c.h.b16 %v48
  %v230 = vunpack.c.l.b16 %v49
  %v231 = vunpack.c.h.b16 %v49
  %v232 = vunpack.c.l.b16 %v50
  %v233 = vunpack.c.h.b16 %v50
  %v234 = vunpack.c.l.b16 %v51
  %v235 = vunpack.c.h.b16 %v51
  %v236 = vunpack.c.l.b16 %v52
  %v237 = vunpack.c.h.b16 %v52
  %v238 = vpack.c.b16 %v178, %v174
  %v239 = vpack.c.b16 %v179, %v175
  %v240 = vpack.c.b16 %v180, %v176
  %v241 = vpack.c.b16 %v181, %v177
  %v242 = vpack.c.b16 %v186, %v182
  %v243 = vpack.c.b16 %v187, %v183
  %v244 = vpack.c.b16 %v188, %v184
  %v245 = vpack.c.b16 %v189, %v185
  %v246 = vpack.c.b16 %v194, %v190
  %v247 = vpack.c.b16 %v195, %v191
  %v248 = vpack.c.b16 %v196, %v192
  %v249 = vpack.c.b16 %v197, %v193
  %v250 = vpack.c.b16 %v202, %v198
  %v251 = vpack.c.b16 %v203, %v199
  %v252 = vpack.c.b16 %v204, %v200
  %v253 = vpack.c.b16 %v205, %v201
  %v254 = vpack.c.b16 %v210, %v206
  %v255 = vpack.c.b16 %v211, %v207
  %v256 = vpack.c.b16 %v212, %v208
  %v257 = vpack.c.b16 %v213, %v209
  %v258 = vpack.c.b16 %v218, %v214
  %v259 = vpack.c.b16 %v219, %v215
  %v260 = vpack.c.b16 %v220, %v216
  %v261 = vpack.c.b16 %v221, %v217
  %v262 = vpack.c.b16 %v226, %v222
  %v263 = vpack.c.b16 %v227, %v223
  %v264 = vpack.c.b16 %v228, %v224
  %v265 = vpack.c.b16 %v229, %v225
  %v266 = vpack.c.b16 %v234, %v230
  %v267 = vpack.c.b16 %v235, %v231
  %v268 = vpack.c.b16 %v236, %v232
  %v269 = vpack.c.b16 %v237, %v233
  %302 = vmatprep.subr.bf16.mxu0 %v239
  %303 = vmatpush1.bf16.msra.mxu0 %v238
  %304 = vmatprep.subr.bf16.mxu0 %v243
  %305 = vmatpush1.bf16.msra.mxu0 %v242
  %306 = vmatprep.subr.bf16.mxu0 %v247
  %307 = vmatpush1.bf16.msra.mxu0 %v246
  %308 = vmatprep.subr.bf16.mxu0 %v251
  %309 = vmatpush1.bf16.msra.mxu0 %v250
  %310 = vmatprep.subr.bf16.mxu0 %v255
  %311 = vmatpush1.bf16.msra.mxu0 %v254
  %312 = vmatprep.subr.bf16.mxu0 %v259
  %313 = vmatpush1.bf16.msra.mxu0 %v258
  %314 = vmatprep.subr.bf16.mxu0 %v263
  %315 = vmatpush1.bf16.msra.mxu0 %v262
  %316 = vmatprep.subr.bf16.mxu0 %v267
  %317 = vmatpush1.bf16.msra.mxu0 %v266
  %318 = vmatprep.subr.bf16.mxu0 0
  %319 = vmatpush1.bf16.msra.mxu0 0
  %320 = vmatprep.subr.bf16.mxu0 0
  %321 = vmatpush1.bf16.msra.mxu0 0
  %322 = vmatprep.subr.bf16.mxu0 0
  %323 = vmatpush1.bf16.msra.mxu0 0
  %324 = vmatprep.subr.bf16.mxu0 0
  %325 = vmatpush1.bf16.msra.mxu0 0
  %326 = vmatprep.subr.bf16.mxu0 0
  %327 = vmatpush1.bf16.msra.mxu0 0
  %328 = vmatprep.subr.bf16.mxu0 0
  %329 = vmatpush1.bf16.msra.mxu0 0
  %330 = vmatprep.subr.bf16.mxu0 0
  %331 = vmatpush1.bf16.msra.mxu0 0
  %332 = vmatprep.subr.bf16.mxu0 0
  %333 = vmatpush1.bf16.msra.mxu0 0
  %334 = vmatprep.mubr.bf16.mxu0 0
  %335 = vmatmul.mubr.bf16.gmra.mrb[0].mxu0 %v120
  %v336 = vpop.f32.mrb[0].mxu0
  %v337 = vadd.f32 %v125, %v336
  %v338 = vpop.f32.mrb[0].mxu0
  %v339 = vadd.f32 %v129, %v338
  %v340 = vpop.f32.mrb[0].mxu0
  %v341 = vpop.f32.mrb[0].mxu0
  %342 = vdwg.mxu0
  %343 = vmatprep.subr.bf16.mxu0 %v241
  %344 = vmatpush1.bf16.msra.mxu0 %v240
  %345 = vmatprep.subr.bf16.mxu0 %v245
  %346 = vmatpush1.bf16.msra.mxu0 %v244
  %347 = vmatprep.subr.bf16.mxu0 %v249
  %348 = vmatpush1.bf16.msra.mxu0 %v248
  %349 = vmatprep.subr.bf16.mxu0 %v253
  %350 = vmatpush1.bf16.msra.mxu0 %v252
  %351 = vmatprep.subr.bf16.mxu0 %v257
  %352 = vmatpush1.bf16.msra.mxu0 %v256
  %353 = vmatprep.subr.bf16.mxu0 %v261
  %354 = vmatpush1.bf16.msra.mxu0 %v260
  %355 = vmatprep.subr.bf16.mxu0 %v265
  %356 = vmatpush1.bf16.msra.mxu0 %v264
  %357 = vmatprep.subr.bf16.mxu0 %v269
  %358 = vmatpush1.bf16.msra.mxu0 %v268
  %359 = vmatprep.subr.bf16.mxu0 0
  %360 = vmatpush1.bf16.msra.mxu0 0
  %361 = vmatprep.subr.bf16.mxu0 0
  %362 = vmatpush1.bf16.msra.mxu0 0
  %363 = vmatprep.subr.bf16.mxu0 0
  %364 = vmatpush1.bf16.msra.mxu0 0
  %365 = vmatprep.subr.bf16.mxu0 0
  %366 = vmatpush1.bf16.msra.mxu0 0
  %367 = vmatprep.subr.bf16.mxu0 0
  %368 = vmatpush1.bf16.msra.mxu0 0
  %369 = vmatprep.subr.bf16.mxu0 0
  %370 = vmatpush1.bf16.msra.mxu0 0
  %371 = vmatprep.subr.bf16.mxu0 0
  %372 = vmatpush1.bf16.msra.mxu0 0
  %373 = vmatprep.subr.bf16.mxu0 0
  %374 = vmatpush1.bf16.msra.mxu0 0
  %375 = vmatprep.mubr.bf16.mxu0 0
  %376 = vmatmul.mubr.bf16.gmra.mrb[0].mxu0 %v120
  %v377 = vpop.f32.mrb[0].mxu0
  %v378 = vadd.f32 %v133, %v377
  %v379 = vpop.f32.mrb[0].mxu0
  %v380 = vadd.f32 %v137, %v379
  %v381 = vpop.f32.mrb[0].mxu0
  %v382 = vpop.f32.mrb[0].mxu0
  %383 = vdwg.mxu0
  %v384 = vmax.f32 %v337, 0.0
  %v385 = vmax.f32 %v339, 0.0
  %v386 = vmax.f32 %v378, 0.0
  %v387 = vmax.f32 %v380, 0.0
  %v388 = vpack.c.bf16 %v384, %v384
  %v389 = vpack.c.bf16 %v385, %v385
  %v390 = vpack.c.bf16 %v386, %v386
  %v391 = vpack.c.bf16 %v387, %v387
  %v393 = vlaneseq
  %v394 = vshrl.u32 %v393, 7
  %v395 = vsub.s32 0, %v394
  %v396 = vrot.slane %v118, %v395
  %v462 = vunpack.c.l.b16 %v54
  %v463 = vunpack.c.l.b16 %v55
  %v464 = vunpack.c.l.b16 %v56
  %v465 = vunpack.c.l.b16 %v57
  %v466 = vunpack.c.l.b16 %v58
  %v467 = vunpack.c.l.b16 %v59
  %v468 = vunpack.c.l.b16 %v60
  %v469 = vunpack.c.l.b16 %v61
  %v470 = vunpack.c.l.b16 %v62
  %v471 = vunpack.c.l.b16 %v63
  %v472 = vunpack.c.l.b16 %v64
  %v473 = vunpack.c.l.b16 %v65
  %v474 = vunpack.c.l.b16 %v66
  %v475 = vunpack.c.l.b16 %v67
  %v476 = vunpack.c.l.b16 %v68
  %v477 = vunpack.c.l.b16 %v69
  %v478 = vunpack.c.l.b16 %v70
  %v479 = vunpack.c.l.b16 %v71
  %v480 = vunpack.c.l.b16 %v72
  %v481 = vunpack.c.l.b16 %v73
  %v482 = vunpack.c.l.b16 %v74
  %v483 = vunpack.c.l.b16 %v75
  %v484 = vunpack.c.l.b16 %v76
  %v485 = vunpack.c.l.b16 %v77
  %v486 = vunpack.c.l.b16 %v78
  %v487 = vunpack.c.l.b16 %v79
  %v488 = vunpack.c.l.b16 %v80
  %v489 = vunpack.c.l.b16 %v81
  %v490 = vunpack.c.l.b16 %v82
  %v491 = vunpack.c.l.b16 %v83
  %v492 = vunpack.c.l.b16 %v84
  %v493 = vunpack.c.l.b16 %v85
  %v494 = vunpack.c.l.b16 %v86
  %v495 = vunpack.c.l.b16 %v87
  %v496 = vunpack.c.l.b16 %v88
  %v497 = vunpack.c.l.b16 %v89
  %v498 = vunpack.c.l.b16 %v90
  %v499 = vunpack.c.l.b16 %v91
  %v500 = vunpack.c.l.b16 %v92
  %v501 = vunpack.c.l.b16 %v93
  %v502 = vunpack.c.l.b16 %v94
  %v503 = vunpack.c.l.b16 %v95
  %v504 = vunpack.c.l.b16 %v96
  %v505 = vunpack.c.l.b16 %v97
  %v506 = vunpack.c.l.b16 %v98
  %v507 = vunpack.c.l.b16 %v99
  %v508 = vunpack.c.l.b16 %v100
  %v509 = vunpack.c.l.b16 %v101
  %v510 = vunpack.c.l.b16 %v102
  %v511 = vunpack.c.l.b16 %v103
  %v512 = vunpack.c.l.b16 %v104
  %v513 = vunpack.c.l.b16 %v105
  %v514 = vunpack.c.l.b16 %v106
  %v515 = vunpack.c.l.b16 %v107
  %v516 = vunpack.c.l.b16 %v108
  %v517 = vunpack.c.l.b16 %v109
  %v518 = vunpack.c.l.b16 %v110
  %v519 = vunpack.c.l.b16 %v111
  %v520 = vunpack.c.l.b16 %v112
  %v521 = vunpack.c.l.b16 %v113
  %v522 = vunpack.c.l.b16 %v114
  %v523 = vunpack.c.l.b16 %v115
  %v524 = vunpack.c.l.b16 %v116
  %v525 = vunpack.c.l.b16 %v117
  %v526 = vpack.c.b16 %v463, %v462
  %v527 = vpack.c.b16 %v465, %v464
  %v528 = vpack.c.b16 %v467, %v466
  %v529 = vpack.c.b16 %v469, %v468
  %v530 = vpack.c.b16 %v471, %v470
  %v531 = vpack.c.b16 %v473, %v472
  %v532 = vpack.c.b16 %v475, %v474
  %v533 = vpack.c.b16 %v477, %v476
  %v534 = vpack.c.b16 %v479, %v478
  %v535 = vpack.c.b16 %v481, %v480
  %v536 = vpack.c.b16 %v483, %v482
  %v537 = vpack.c.b16 %v485, %v484
  %v538 = vpack.c.b16 %v487, %v486
  %v539 = vpack.c.b16 %v489, %v488
  %v540 = vpack.c.b16 %v491, %v490
  %v541 = vpack.c.b16 %v493, %v492
  %v542 = vpack.c.b16 %v495, %v494
  %v543 = vpack.c.b16 %v497, %v496
  %v544 = vpack.c.b16 %v499, %v498
  %v545 = vpack.c.b16 %v501, %v500
  %v546 = vpack.c.b16 %v503, %v502
  %v547 = vpack.c.b16 %v505, %v504
  %v548 = vpack.c.b16 %v507, %v506
  %v549 = vpack.c.b16 %v509, %v508
  %v550 = vpack.c.b16 %v511, %v510
  %v551 = vpack.c.b16 %v513, %v512
  %v552 = vpack.c.b16 %v515, %v514
  %v553 = vpack.c.b16 %v517, %v516
  %v554 = vpack.c.b16 %v519, %v518
  %v555 = vpack.c.b16 %v521, %v520
  %v556 = vpack.c.b16 %v523, %v522
  %v557 = vpack.c.b16 %v525, %v524
  %590 = vmatprep.subr.bf16.mxu0 0
  %591 = vmatpush1.bf16.msra.mxu0 %v526
  %592 = vmatprep.subr.bf16.mxu0 0
  %593 = vmatpush1.bf16.msra.mxu0 %v527
  %594 = vmatprep.subr.bf16.mxu0 0
  %595 = vmatpush1.bf16.msra.mxu0 %v528
  %596 = vmatprep.subr.bf16.mxu0 0
  %597 = vmatpush1.bf16.msra.mxu0 %v529
  %598 = vmatprep.subr.bf16.mxu0 0
  %599 = vmatpush1.bf16.msra.mxu0 %v530
  %600 = vmatprep.subr.bf16.mxu0 0
  %601 = vmatpush1.bf16.msra.mxu0 %v531
  %602 = vmatprep.subr.bf16.mxu0 0
  %603 = vmatpush1.bf16.msra.mxu0 %v532
  %604 = vmatprep.subr.bf16.mxu0 0
  %605 = vmatpush1.bf16.msra.mxu0 %v533
  %606 = vmatprep.subr.bf16.mxu0 0
  %607 = vmatpush1.bf16.msra.mxu0 %v534
  %608 = vmatprep.subr.bf16.mxu0 0
  %609 = vmatpush1.bf16.msra.mxu0 %v535
  %610 = vmatprep.subr.bf16.mxu0 0
  %611 = vmatpush1.bf16.msra.mxu0 %v536
  %612 = vmatprep.subr.bf16.mxu0 0
  %613 = vmatpush1.bf16.msra.mxu0 %v537
  %614 = vmatprep.subr.bf16.mxu0 0
  %615 = vmatpush1.bf16.msra.mxu0 %v538
  %616 = vmatprep.subr.bf16.mxu0 0
  %617 = vmatpush1.bf16.msra.mxu0 %v539
  %618 = vmatprep.subr.bf16.mxu0 0
  %619 = vmatpush1.bf16.msra.mxu0 %v540
  %620 = vmatprep.subr.bf16.mxu0 0
  %621 = vmatpush1.bf16.msra.mxu0 %v541
  %622 = vmatprep.mubr.bf16.mxu0 %v389
  %623 = vmatmul.mubr.bf16.gmra.mrb[0].mxu0 %v388
  %v624 = vpop.f32.mrb[0].mxu0
  %v625 = vadd.f32 %v396, %v624
  %v626 = vpop.f32.mrb[0].mxu0
  %v627 = vpop.f32.mrb[0].mxu0
  %v628 = vpop.f32.mrb[0].mxu0
  %629 = vdwg.mxu0
  %630 = vmatprep.subr.bf16.mxu0 0
  %631 = vmatpush1.bf16.msra.mxu0 %v542
  %632 = vmatprep.subr.bf16.mxu0 0
  %633 = vmatpush1.bf16.msra.mxu0 %v543
  %634 = vmatprep.subr.bf16.mxu0 0
  %635 = vmatpush1.bf16.msra.mxu0 %v544
  %636 = vmatprep.subr.bf16.mxu0 0
  %637 = vmatpush1.bf16.msra.mxu0 %v545
  %638 = vmatprep.subr.bf16.mxu0 0
  %639 = vmatpush1.bf16.msra.mxu0 %v546
  %640 = vmatprep.subr.bf16.mxu0 0
  %641 = vmatpush1.bf16.msra.mxu0 %v547
  %642 = vmatprep.subr.bf16.mxu0 0
  %643 = vmatpush1.bf16.msra.mxu0 %v548
  %644 = vmatprep.subr.bf16.mxu0 0
  %645 = vmatpush1.bf16.msra.mxu0 %v549
  %646 = vmatprep.subr.bf16.mxu0 0
  %647 = vmatpush1.bf16.msra.mxu0 %v550
  %648 = vmatprep.subr.bf16.mxu0 0
  %649 = vmatpush1.bf16.msra.mxu0 %v551
  %650 = vmatprep.subr.bf16.mxu0 0
  %651 = vmatpush1.bf16.msra.mxu0 %v552
  %652 = vmatprep.subr.bf16.mxu0 0
  %653 = vmatpush1.bf16.msra.mxu0 %v553
  %654 = vmatprep.subr.bf16.mxu0 0
  %655 = vmatpush1.bf16.msra.mxu0 %v554
  %656 = vmatprep.subr.bf16.mxu0 0
  %657 = vmatpush1.bf16.msra.mxu0 %v555
  %658 = vmatprep.subr.bf16.mxu0 0
  %659 = vmatpush1.bf16.msra.mxu0 %v556
  %660 = vmatprep.subr.bf16.mxu0 0
  %661 = vmatpush1.bf16.msra.mxu0 %v557
  %662 = vmatprep.mubr.bf16.mxu0 %v391
  %663 = vmatmul.mubr.bf16.gmra.mrb[0].mxu0 %v390
  %v664 = vpop.f32.mrb[0].mxu0
  %v665 = vadd.f32 %v625, %v664
  %v666 = vpop.f32.mrb[0].mxu0
  %v667 = vpop.f32.mrb[0].mxu0
  %v668 = vpop.f32.mrb[0].mxu0
  %669 = vdwg.mxu0
  %vm670 = vcmask 123904
  %671 = vst.msk [vmem:[%s5] sm:$0x3] %vm670, %v665
  %s672 = scalar_lea.vmem %s0, 1
  %v673 = vld [vmem:[%s672] ss:$8 sm:$0x3]
  %v674 = vpack.c.bf16 %v673, %v673
  %675 = vmatprep.subr.bf16.mxu0 %v239
  %676 = vmatpush1.bf16.msra.mxu0 %v238
  %677 = vmatprep.subr.bf16.mxu0 %v243
  %678 = vmatpush1.bf16.msra.mxu0 %v242
  %679 = vmatprep.subr.bf16.mxu0 %v247
  %680 = vmatpush1.bf16.msra.mxu0 %v246
  %681 = vmatprep.subr.bf16.mxu0 %v251
  %682 = vmatpush1.bf16.msra.mxu0 %v250
  %683 = vmatprep.subr.bf16.mxu0 %v255
  %684 = vmatpush1.bf16.msra.mxu0 %v254
  %685 = vmatprep.subr.bf16.mxu0 %v259
  %686 = vmatpush1.bf16.msra.mxu0 %v258
  %687 = vmatprep.subr.bf16.mxu0 %v263
  %688 = vmatpush1.bf16.msra.mxu0 %v262
  %689 = vmatprep.subr.bf16.mxu0 %v267
  %690 = vmatpush1.bf16.msra.mxu0 %v266
  %691 = vmatprep.subr.bf16.mxu0 0
  %692 = vmatpush1.bf16.msra.mxu0 0
  %693 = vmatprep.subr.bf16.mxu0 0
  %694 = vmatpush1.bf16.msra.mxu0 0
  %695 = vmatprep.subr.bf16.mxu0 0
  %696 = vmatpush1.bf16.msra.mxu0 0
  %697 = vmatprep.subr.bf16.mxu0 0
  %698 = vmatpush1.bf16.msra.mxu0 0
  %699 = vmatprep.subr.bf16.mxu0 0
  %700 = vmatpush1.bf16.msra.mxu0 0
  %701 = vmatprep.subr.bf16.mxu0 0
  %702 = vmatpush1.bf16.msra.mxu0 0
  %703 = vmatprep.subr.bf16.mxu0 0
  %704 = vmatpush1.bf16.msra.mxu0 0
  %705 = vmatprep.subr.bf16.mxu0 0
  %706 = vmatpush1.bf16.msra.mxu0 0
  %707 = vmatprep.mubr.bf16.mxu0 0
  %708 = vmatmul.mubr.bf16.gmra.mrb[0].mxu0 %v674
  %v709 = vpop.f32.mrb[0].mxu0
  %v710 = vadd.f32 %v125, %v709
  %v711 = vpop.f32.mrb[0].mxu0
  %v712 = vadd.f32 %v129, %v711
  %v713 = vpop.f32.mrb[0].mxu0
  %v714 = vpop.f32.mrb[0].mxu0
  %715 = vdwg.mxu0
  %716 = vmatprep.subr.bf16.mxu0 %v241
  %717 = vmatpush1.bf16.msra.mxu0 %v240
  %718 = vmatprep.subr.bf16.mxu0 %v245
  %719 = vmatpush1.bf16.msra.mxu0 %v244
  %720 = vmatprep.subr.bf16.mxu0 %v249
  %721 = vmatpush1.bf16.msra.mxu0 %v248
  %722 = vmatprep.subr.bf16.mxu0 %v253
  %723 = vmatpush1.bf16.msra.mxu0 %v252
  %724 = vmatprep.subr.bf16.mxu0 %v257
  %725 = vmatpush1.bf16.msra.mxu0 %v256
  %726 = vmatprep.subr.bf16.mxu0 %v261
  %727 = vmatpush1.bf16.msra.mxu0 %v260
  %728 = vmatprep.subr.bf16.mxu0 %v265
  %729 = vmatpush1.bf16.msra.mxu0 %v264
  %730 = vmatprep.subr.bf16.mxu0 %v269
  %731 = vmatpush1.bf16.msra.mxu0 %v268
  %732 = vmatprep.subr.bf16.mxu0 0
  %733 = vmatpush1.bf16.msra.mxu0 0
  %734 = vmatprep.subr.bf16.mxu0 0
  %735 = vmatpush1.bf16.msra.mxu0 0
  %736 = vmatprep.subr.bf16.mxu0 0
  %737 = vmatpush1.bf16.msra.mxu0 0
  %738 = vmatprep.subr.bf16.mxu0 0
  %739 = vmatpush1.bf16.msra.mxu0 0
  %740 = vmatprep.subr.bf16.mxu0 0
  %741 = vmatpush1.bf16.msra.mxu0 0
  %742 = vmatprep.subr.bf16.mxu0 0
  %743 = vmatpush1.bf16.msra.mxu0 0
  %744 = vmatprep.subr.bf16.mxu0 0
  %745 = vmatpush1.bf16.msra.mxu0 0
  %746 = vmatprep.subr.bf16.mxu0 0
  %747 = vmatpush1.bf16.msra.mxu0 0
  %748 = vmatprep.mubr.bf16.mxu0 0
  %749 = vmatmul.mubr.bf16.gmra.mrb[0].mxu0 %v674
  %v750 = vpop.f32.mrb[0].mxu0
  %v751 = vadd.f32 %v133, %v750
  %v752 = vpop.f32.mrb[0].mxu0
  %v753 = vadd.f32 %v137, %v752
  %v754 = vpop.f32.mrb[0].mxu0
  %v755 = vpop.f32.mrb[0].mxu0
  %756 = vdwg.mxu0
  %v757 = vmax.f32 %v710, 0.0
  %v758 = vmax.f32 %v712, 0.0
  %v759 = vmax.f32 %v751, 0.0
  %v760 = vmax.f32 %v753, 0.0
  %v761 = vpack.c.bf16 %v757, %v757
  %v762 = vpack.c.bf16 %v758, %v758
  %v763 = vpack.c.bf16 %v759, %v759
  %v764 = vpack.c.bf16 %v760, %v760
  %765 = vmatprep.subr.bf16.mxu0 0
  %766 = vmatpush1.bf16.msra.mxu0 %v526
  %767 = vmatprep.subr.bf16.mxu0 0
  %768 = vmatpush1.bf16.msra.mxu0 %v527
  %769 = vmatprep.subr.bf16.mxu0 0
  %770 = vmatpush1.bf16.msra.mxu0 %v528
  %771 = vmatprep.subr.bf16.mxu0 0
  %772 = vmatpush1.bf16.msra.mxu0 %v529
  %773 = vmatprep.subr.bf16.mxu0 0
  %774 = vmatpush1.bf16.msra.mxu0 %v530
  %775 = vmatprep.subr.bf16.mxu0 0
  %776 = vmatpush1.bf16.msra.mxu0 %v531
  %777 = vmatprep.subr.bf16.mxu0 0
  %778 = vmatpush1.bf16.msra.mxu0 %v532
  %779 = vmatprep.subr.bf16.mxu0 0
  %780 = vmatpush1.bf16.msra.mxu0 %v533
  %781 = vmatprep.subr.bf16.mxu0 0
  %782 = vmatpush1.bf16.msra.mxu0 %v534
  %783 = vmatprep.subr.bf16.mxu0 0
  %784 = vmatpush1.bf16.msra.mxu0 %v535
  %785 = vmatprep.subr.bf16.mxu0 0
  %786 = vmatpush1.bf16.msra.mxu0 %v536
  %787 = vmatprep.subr.bf16.mxu0 0
  %788 = vmatpush1.bf16.msra.mxu0 %v537
  %789 = vmatprep.subr.bf16.mxu0 0
  %790 = vmatpush1.bf16.msra.mxu0 %v538
  %791 = vmatprep.subr.bf16.mxu0 0
  %792 = vmatpush1.bf16.msra.mxu0 %v539
  %793 = vmatprep.subr.bf16.mxu0 0
  %794 = vmatpush1.bf16.msra.mxu0 %v540
  %795 = vmatprep.subr.bf16.mxu0 0
  %796 = vmatpush1.bf16.msra.mxu0 %v541
  %797 = vmatprep.mubr.bf16.mxu0 %v762
  %798 = vmatmul.mubr.bf16.gmra.mrb[0].mxu0 %v761
  %v799 = vpop.f32.mrb[0].mxu0
  %v800 = vadd.f32 %v396, %v799
  %v801 = vpop.f32.mrb[0].mxu0
  %v802 = vpop.f32.mrb[0].mxu0
  %v803 = vpop.f32.mrb[0].mxu0
  %804 = vdwg.mxu0
  %805 = vmatprep.subr.bf16.mxu0 0
  %806 = vmatpush1.bf16.msra.mxu0 %v542
  %807 = vmatprep.subr.bf16.mxu0 0
  %808 = vmatpush1.bf16.msra.mxu0 %v543
  %809 = vmatprep.subr.bf16.mxu0 0
  %810 = vmatpush1.bf16.msra.mxu0 %v544
  %811 = vmatprep.subr.bf16.mxu0 0
  %812 = vmatpush1.bf16.msra.mxu0 %v545
  %813 = vmatprep.subr.bf16.mxu0 0
  %814 = vmatpush1.bf16.msra.mxu0 %v546
  %815 = vmatprep.subr.bf16.mxu0 0
  %816 = vmatpush1.bf16.msra.mxu0 %v547
  %817 = vmatprep.subr.bf16.mxu0 0
  %818 = vmatpush1.bf16.msra.mxu0 %v548
  %819 = vmatprep.subr.bf16.mxu0 0
  %820 = vmatpush1.bf16.msra.mxu0 %v549
  %821 = vmatprep.subr.bf16.mxu0 0
  %822 = vmatpush1.bf16.msra.mxu0 %v550
  %823 = vmatprep.subr.bf16.mxu0 0
  %824 = vmatpush1.bf16.msra.mxu0 %v551
  %825 = vmatprep.subr.bf16.mxu0 0
  %826 = vmatpush1.bf16.msra.mxu0 %v552
  %827 = vmatprep.subr.bf16.mxu0 0
  %828 = vmatpush1.bf16.msra.mxu0 %v553
  %829 = vmatprep.subr.bf16.mxu0 0
  %830 = vmatpush1.bf16.msra.mxu0 %v554
  %831 = vmatprep.subr.bf16.mxu0 0
  %832 = vmatpush1.bf16.msra.mxu0 %v555
  %833 = vmatprep.subr.bf16.mxu0 0
  %834 = vmatpush1.bf16.msra.mxu0 %v556
  %835 = vmatprep.subr.bf16.mxu0 0
  %836 = vmatpush1.bf16.msra.mxu0 %v557
  %837 = vmatprep.mubr.bf16.mxu0 %v764
  %838 = vmatmul.mubr.bf16.gmra.mrb[0].mxu0 %v763
  %v839 = vpop.f32.mrb[0].mxu0
  %v840 = vadd.f32 %v800, %v839
  %v841 = vpop.f32.mrb[0].mxu0
  %v842 = vpop.f32.mrb[0].mxu0
  %v843 = vpop.f32.mrb[0].mxu0
  %844 = vdwg.mxu0
  %846 = vrot.lane.b32.xlu0 %v840, 16
  %v847 = vpop.permute.xlu0 %846
  %vm849 = vcmask 255104
  %850 = vst.msk [vmem:[%s5] sm:$0x3] %vm849, %v847
  %s851 = scalar_lea.vmem %s0, 2
  %v852 = vld [vmem:[%s851] ss:$8 sm:$0x3]
  %v853 = vpack.c.bf16 %v852, %v852
  %854 = vmatprep.subr.bf16.mxu0 %v239
  %855 = vmatpush1.bf16.msra.mxu0 %v238
  %856 = vmatprep.subr.bf16.mxu0 %v243
  %857 = vmatpush1.bf16.msra.mxu0 %v242
  %858 = vmatprep.subr.bf16.mxu0 %v247
  %859 = vmatpush1.bf16.msra.mxu0 %v246
  %860 = vmatprep.subr.bf16.mxu0 %v251
  %861 = vmatpush1.bf16.msra.mxu0 %v250
  %862 = vmatprep.subr.bf16.mxu0 %v255
  %863 = vmatpush1.bf16.msra.mxu0 %v254
  %864 = vmatprep.subr.bf16.mxu0 %v259
  %865 = vmatpush1.bf16.msra.mxu0 %v258
  %866 = vmatprep.subr.bf16.mxu0 %v263
  %867 = vmatpush1.bf16.msra.mxu0 %v262
  %868 = vmatprep.subr.bf16.mxu0 %v267
  %869 = vmatpush1.bf16.msra.mxu0 %v266
  %870 = vmatprep.subr.bf16.mxu0 0
  %871 = vmatpush1.bf16.msra.mxu0 0
  %872 = vmatprep.subr.bf16.mxu0 0
  %873 = vmatpush1.bf16.msra.mxu0 0
  %874 = vmatprep.subr.bf16.mxu0 0
  %875 = vmatpush1.bf16.msra.mxu0 0
  %876 = vmatprep.subr.bf16.mxu0 0
  %877 = vmatpush1.bf16.msra.mxu0 0
  %878 = vmatprep.subr.bf16.mxu0 0
  %879 = vmatpush1.bf16.msra.mxu0 0
  %880 = vmatprep.subr.bf16.mxu0 0
  %881 = vmatpush1.bf16.msra.mxu0 0
  %882 = vmatprep.subr.bf16.mxu0 0
  %883 = vmatpush1.bf16.msra.mxu0 0
  %884 = vmatprep.subr.bf16.mxu0 0
  %885 = vmatpush1.bf16.msra.mxu0 0
  %886 = vmatprep.mubr.bf16.mxu0 0
  %887 = vmatmul.mubr.bf16.gmra.mrb[0].mxu0 %v853
  %v888 = vpop.f32.mrb[0].mxu0
  %v889 = vadd.f32 %v125, %v888
  %v890 = vpop.f32.mrb[0].mxu0
  %v891 = vadd.f32 %v129, %v890
  %v892 = vpop.f32.mrb[0].mxu0
  %v893 = vpop.f32.mrb[0].mxu0
  %894 = vdwg.mxu0
  %895 = vmatprep.subr.bf16.mxu0 %v241
  %896 = vmatpush1.bf16.msra.mxu0 %v240
  %897 = vmatprep.subr.bf16.mxu0 %v245
  %898 = vmatpush1.bf16.msra.mxu0 %v244
  %899 = vmatprep.subr.bf16.mxu0 %v249
  %900 = vmatpush1.bf16.msra.mxu0 %v248
  %901 = vmatprep.subr.bf16.mxu0 %v253
  %902 = vmatpush1.bf16.msra.mxu0 %v252
  %903 = vmatprep.subr.bf16.mxu0 %v257
  %904 = vmatpush1.bf16.msra.mxu0 %v256
  %905 = vmatprep.subr.bf16.mxu0 %v261
  %906 = vmatpush1.bf16.msra.mxu0 %v260
  %907 = vmatprep.subr.bf16.mxu0 %v265
  %908 = vmatpush1.bf16.msra.mxu0 %v264
  %909 = vmatprep.subr.bf16.mxu0 %v269
  %910 = vmatpush1.bf16.msra.mxu0 %v268
  %911 = vmatprep.subr.bf16.mxu0 0
  %912 = vmatpush1.bf16.msra.mxu0 0
  %913 = vmatprep.subr.bf16.mxu0 0
  %914 = vmatpush1.bf16.msra.mxu0 0
  %915 = vmatprep.subr.bf16.mxu0 0
  %916 = vmatpush1.bf16.msra.mxu0 0
  %917 = vmatprep.subr.bf16.mxu0 0
  %918 = vmatpush1.bf16.msra.mxu0 0
  %919 = vmatprep.subr.bf16.mxu0 0
  %920 = vmatpush1.bf16.msra.mxu0 0
  %921 = vmatprep.subr.bf16.mxu0 0
  %922 = vmatpush1.bf16.msra.mxu0 0
  %923 = vmatprep.subr.bf16.mxu0 0
  %924 = vmatpush1.bf16.msra.mxu0 0
  %925 = vmatprep.subr.bf16.mxu0 0
  %926 = vmatpush1.bf16.msra.mxu0 0
  %927 = vmatprep.mubr.bf16.mxu0 0
  %928 = vmatmul.mubr.bf16.gmra.mrb[0].mxu0 %v853
  %v929 = vpop.f32.mrb[0].mxu0
  %v930 = vadd.f32 %v133, %v929
  %v931 = vpop.f32.mrb[0].mxu0
  %v932 = vadd.f32 %v137, %v931
  %v933 = vpop.f32.mrb[0].mxu0
  %v934 = vpop.f32.mrb[0].mxu0
  %935 = vdwg.mxu0
  %v936 = vmax.f32 %v889, 0.0
  %v937 = vmax.f32 %v891, 0.0
  %v938 = vmax.f32 %v930, 0.0
  %v939 = vmax.f32 %v932, 0.0
  %v940 = vpack.c.bf16 %v936, %v936
  %v941 = vpack.c.bf16 %v937, %v937
  %v942 = vpack.c.bf16 %v938, %v938
  %v943 = vpack.c.bf16 %v939, %v939
  %944 = vmatprep.subr.bf16.mxu0 0
  %945 = vmatpush1.bf16.msra.mxu0 %v526
  %946 = vmatprep.subr.bf16.mxu0 0
  %947 = vmatpush1.bf16.msra.mxu0 %v527
  %948 = vmatprep.subr.bf16.mxu0 0
  %949 = vmatpush1.bf16.msra.mxu0 %v528
  %950 = vmatprep.subr.bf16.mxu0 0
  %951 = vmatpush1.bf16.msra.mxu0 %v529
  %952 = vmatprep.subr.bf16.mxu0 0
  %953 = vmatpush1.bf16.msra.mxu0 %v530
  %954 = vmatprep.subr.bf16.mxu0 0
  %955 = vmatpush1.bf16.msra.mxu0 %v531
  %956 = vmatprep.subr.bf16.mxu0 0
  %957 = vmatpush1.bf16.msra.mxu0 %v532
  %958 = vmatprep.subr.bf16.mxu0 0
  %959 = vmatpush1.bf16.msra.mxu0 %v533
  %960 = vmatprep.subr.bf16.mxu0 0
  %961 = vmatpush1.bf16.msra.mxu0 %v534
  %962 = vmatprep.subr.bf16.mxu0 0
  %963 = vmatpush1.bf16.msra.mxu0 %v535
  %964 = vmatprep.subr.bf16.mxu0 0
  %965 = vmatpush1.bf16.msra.mxu0 %v536
  %966 = vmatprep.subr.bf16.mxu0 0
  %967 = vmatpush1.bf16.msra.mxu0 %v537
  %968 = vmatprep.subr.bf16.mxu0 0
  %969 = vmatpush1.bf16.msra.mxu0 %v538
  %970 = vmatprep.subr.bf16.mxu0 0
  %971 = vmatpush1.bf16.msra.mxu0 %v539
  %972 = vmatprep.subr.bf16.mxu0 0
  %973 = vmatpush1.bf16.msra.mxu0 %v540
  %974 = vmatprep.subr.bf16.mxu0 0
  %975 = vmatpush1.bf16.msra.mxu0 %v541
  %976 = vmatprep.mubr.bf16.mxu0 %v941
  %977 = vmatmul.mubr.bf16.gmra.mrb[0].mxu0 %v940
  %v978 = vpop.f32.mrb[0].mxu0
  %v979 = vadd.f32 %v396, %v978
  %v980 = vpop.f32.mrb[0].mxu0
  %v981 = vpop.f32.mrb[0].mxu0
  %v982 = vpop.f32.mrb[0].mxu0
  %983 = vdwg.mxu0
  %984 = vmatprep.subr.bf16.mxu0 0
  %985 = vmatpush1.bf16.msra.mxu0 %v542
  %986 = vmatprep.subr.bf16.mxu0 0
  %987 = vmatpush1.bf16.msra.mxu0 %v543
  %988 = vmatprep.subr.bf16.mxu0 0
  %989 = vmatpush1.bf16.msra.mxu0 %v544
  %990 = vmatprep.subr.bf16.mxu0 0
  %991 = vmatpush1.bf16.msra.mxu0 %v545
  %992 = vmatprep.subr.bf16.mxu0 0
  %993 = vmatpush1.bf16.msra.mxu0 %v546
  %994 = vmatprep.subr.bf16.mxu0 0
  %995 = vmatpush1.bf16.msra.mxu0 %v547
  %996 = vmatprep.subr.bf16.mxu0 0
  %997 = vmatpush1.bf16.msra.mxu0 %v548
  %998 = vmatprep.subr.bf16.mxu0 0
  %999 = vmatpush1.bf16.msra.mxu0 %v549
  %1000 = vmatprep.subr.bf16.mxu0 0
  %1001 = vmatpush1.bf16.msra.mxu0 %v550
  %1002 = vmatprep.subr.bf16.mxu0 0
  %1003 = vmatpush1.bf16.msra.mxu0 %v551
  %1004 = vmatprep.subr.bf16.mxu0 0
  %1005 = vmatpush1.bf16.msra.mxu0 %v552
  %1006 = vmatprep.subr.bf16.mxu0 0
  %1007 = vmatpush1.bf16.msra.mxu0 %v553
  %1008 = vmatprep.subr.bf16.mxu0 0
  %1009 = vmatpush1.bf16.msra.mxu0 %v554
  %1010 = vmatprep.subr.bf16.mxu0 0
  %1011 = vmatpush1.bf16.msra.mxu0 %v555
  %1012 = vmatprep.subr.bf16.mxu0 0
  %1013 = vmatpush1.bf16.msra.mxu0 %v556
  %1014 = vmatprep.subr.bf16.mxu0 0
  %1015 = vmatpush1.bf16.msra.mxu0 %v557
  %1016 = vmatprep.mubr.bf16.mxu0 %v943
  %1017 = vmatmul.mubr.bf16.gmra.mrb[0].mxu0 %v942
  %v1018 = vpop.f32.mrb[0].mxu0
  %v1019 = vadd.f32 %v979, %v1018
  %v1020 = vpop.f32.mrb[0].mxu0
  %v1021 = vpop.f32.mrb[0].mxu0
  %v1022 = vpop.f32.mrb[0].mxu0
  %1023 = vdwg.mxu0
  %1025 = vrot.lane.b32.xlu0 %v1019, 32
  %v1026 = vpop.permute.xlu0 %1025
  %vm1028 = vcmask 386304
  %1029 = vst.msk [vmem:[%s5] sm:$0x3] %vm1028, %v1026
  %s1030 = scalar_lea.vmem %s0, 3
  %v1031 = vld [vmem:[%s1030] ss:$8 sm:$0x3]
  %v1032 = vpack.c.bf16 %v1031, %v1031
  %1033 = vmatprep.subr.bf16.mxu0 %v239
  %1034 = vmatpush1.bf16.msra.mxu0 %v238
  %1035 = vmatprep.subr.bf16.mxu0 %v243
  %1036 = vmatpush1.bf16.msra.mxu0 %v242
  %1037 = vmatprep.subr.bf16.mxu0 %v247
  %1038 = vmatpush1.bf16.msra.mxu0 %v246
  %1039 = vmatprep.subr.bf16.mxu0 %v251
  %1040 = vmatpush1.bf16.msra.mxu0 %v250
  %1041 = vmatprep.subr.bf16.mxu0 %v255
  %1042 = vmatpush1.bf16.msra.mxu0 %v254
  %1043 = vmatprep.subr.bf16.mxu0 %v259
  %1044 = vmatpush1.bf16.msra.mxu0 %v258
  %1045 = vmatprep.subr.bf16.mxu0 %v263
  %1046 = vmatpush1.bf16.msra.mxu0 %v262
  %1047 = vmatprep.subr.bf16.mxu0 %v267
  %1048 = vmatpush1.bf16.msra.mxu0 %v266
  %1049 = vmatprep.subr.bf16.mxu0 0
  %1050 = vmatpush1.bf16.msra.mxu0 0
  %1051 = vmatprep.subr.bf16.mxu0 0
  %1052 = vmatpush1.bf16.msra.mxu0 0
  %1053 = vmatprep.subr.bf16.mxu0 0
  %1054 = vmatpush1.bf16.msra.mxu0 0
  %1055 = vmatprep.subr.bf16.mxu0 0
  %1056 = vmatpush1.bf16.msra.mxu0 0
  %1057 = vmatprep.subr.bf16.mxu0 0
  %1058 = vmatpush1.bf16.msra.mxu0 0
  %1059 = vmatprep.subr.bf16.mxu0 0
  %1060 = vmatpush1.bf16.msra.mxu0 0
  %1061 = vmatprep.subr.bf16.mxu0 0
  %1062 = vmatpush1.bf16.msra.mxu0 0
  %1063 = vmatprep.subr.bf16.mxu0 0
  %1064 = vmatpush1.bf16.msra.mxu0 0
  %1065 = vmatprep.mubr.bf16.mxu0 0
  %1066 = vmatmul.mubr.bf16.gmra.mrb[0].mxu0 %v1032
  %v1067 = vpop.f32.mrb[0].mxu0
  %v1068 = vadd.f32 %v125, %v1067
  %v1069 = vpop.f32.mrb[0].mxu0
  %v1070 = vadd.f32 %v129, %v1069
  %v1071 = vpop.f32.mrb[0].mxu0
  %v1072 = vpop.f32.mrb[0].mxu0
  %1073 = vdwg.mxu0
  %1074 = vmatprep.subr.bf16.mxu0 %v241
  %1075 = vmatpush1.bf16.msra.mxu0 %v240
  %1076 = vmatprep.subr.bf16.mxu0 %v245
  %1077 = vmatpush1.bf16.msra.mxu0 %v244
  %1078 = vmatprep.subr.bf16.mxu0 %v249
  %1079 = vmatpush1.bf16.msra.mxu0 %v248
  %1080 = vmatprep.subr.bf16.mxu0 %v253
  %1081 = vmatpush1.bf16.msra.mxu0 %v252
  %1082 = vmatprep.subr.bf16.mxu0 %v257
  %1083 = vmatpush1.bf16.msra.mxu0 %v256
  %1084 = vmatprep.subr.bf16.mxu0 %v261
  %1085 = vmatpush1.bf16.msra.mxu0 %v260
  %1086 = vmatprep.subr.bf16.mxu0 %v265
  %1087 = vmatpush1.bf16.msra.mxu0 %v264
  %1088 = vmatprep.subr.bf16.mxu0 %v269
  %1089 = vmatpush1.bf16.msra.mxu0 %v268
  %1090 = vmatprep.subr.bf16.mxu0 0
  %1091 = vmatpush1.bf16.msra.mxu0 0
  %1092 = vmatprep.subr.bf16.mxu0 0
  %1093 = vmatpush1.bf16.msra.mxu0 0
  %1094 = vmatprep.subr.bf16.mxu0 0
  %1095 = vmatpush1.bf16.msra.mxu0 0
  %1096 = vmatprep.subr.bf16.mxu0 0
  %1097 = vmatpush1.bf16.msra.mxu0 0
  %1098 = vmatprep.subr.bf16.mxu0 0
  %1099 = vmatpush1.bf16.msra.mxu0 0
  %1100 = vmatprep.subr.bf16.mxu0 0
  %1101 = vmatpush1.bf16.msra.mxu0 0
  %1102 = vmatprep.subr.bf16.mxu0 0
  %1103 = vmatpush1.bf16.msra.mxu0 0
  %1104 = vmatprep.subr.bf16.mxu0 0
  %1105 = vmatpush1.bf16.msra.mxu0 0
  %1106 = vmatprep.mubr.bf16.mxu0 0
  %1107 = vmatmul.mubr.bf16.gmra.mrb[0].mxu0 %v1032
  %v1108 = vpop.f32.mrb[0].mxu0
  %v1109 = vadd.f32 %v133, %v1108
  %v1110 = vpop.f32.mrb[0].mxu0
  %v1111 = vadd.f32 %v137, %v1110
  %v1112 = vpop.f32.mrb[0].mxu0
  %v1113 = vpop.f32.mrb[0].mxu0
  %1114 = vdwg.mxu0
  %v1115 = vmax.f32 %v1068, 0.0
  %v1116 = vmax.f32 %v1070, 0.0
  %v1117 = vmax.f32 %v1109, 0.0
  %v1118 = vmax.f32 %v1111, 0.0
  %v1119 = vpack.c.bf16 %v1115, %v1115
  %v1120 = vpack.c.bf16 %v1116, %v1116
  %v1121 = vpack.c.bf16 %v1117, %v1117
  %v1122 = vpack.c.bf16 %v1118, %v1118
  %1123 = vmatprep.subr.bf16.mxu0 0
  %1124 = vmatpush1.bf16.msra.mxu0 %v526
  %1125 = vmatprep.subr.bf16.mxu0 0
  %1126 = vmatpush1.bf16.msra.mxu0 %v527
  %1127 = vmatprep.subr.bf16.mxu0 0
  %1128 = vmatpush1.bf16.msra.mxu0 %v528
  %1129 = vmatprep.subr.bf16.mxu0 0
  %1130 = vmatpush1.bf16.msra.mxu0 %v529
  %1131 = vmatprep.subr.bf16.mxu0 0
  %1132 = vmatpush1.bf16.msra.mxu0 %v530
  %1133 = vmatprep.subr.bf16.mxu0 0
  %1134 = vmatpush1.bf16.msra.mxu0 %v531
  %1135 = vmatprep.subr.bf16.mxu0 0
  %1136 = vmatpush1.bf16.msra.mxu0 %v532
  %1137 = vmatprep.subr.bf16.mxu0 0
  %1138 = vmatpush1.bf16.msra.mxu0 %v533
  %1139 = vmatprep.subr.bf16.mxu0 0
  %1140 = vmatpush1.bf16.msra.mxu0 %v534
  %1141 = vmatprep.subr.bf16.mxu0 0
  %1142 = vmatpush1.bf16.msra.mxu0 %v535
  %1143 = vmatprep.subr.bf16.mxu0 0
  %1144 = vmatpush1.bf16.msra.mxu0 %v536
  %1145 = vmatprep.subr.bf16.mxu0 0
  %1146 = vmatpush1.bf16.msra.mxu0 %v537
  %1147 = vmatprep.subr.bf16.mxu0 0
  %1148 = vmatpush1.bf16.msra.mxu0 %v538
  %1149 = vmatprep.subr.bf16.mxu0 0
  %1150 = vmatpush1.bf16.msra.mxu0 %v539
  %1151 = vmatprep.subr.bf16.mxu0 0
  %1152 = vmatpush1.bf16.msra.mxu0 %v540
  %1153 = vmatprep.subr.bf16.mxu0 0
  %1154 = vmatpush1.bf16.msra.mxu0 %v541
  %1155 = vmatprep.mubr.bf16.mxu0 %v1120
  %1156 = vmatmul.mubr.bf16.gmra.mrb[0].mxu0 %v1119
  %v1157 = vpop.f32.mrb[0].mxu0
  %v1158 = vadd.f32 %v396, %v1157
  %v1159 = vpop.f32.mrb[0].mxu0
  %v1160 = vpop.f32.mrb[0].mxu0
  %v1161 = vpop.f32.mrb[0].mxu0
  %1162 = vdwg.mxu0
  %1163 = vmatprep.subr.bf16.mxu0 0
  %1164 = vmatpush1.bf16.msra.mxu0 %v542
  %1165 = vmatprep.subr.bf16.mxu0 0
  %1166 = vmatpush1.bf16.msra.mxu0 %v543
  %1167 = vmatprep.subr.bf16.mxu0 0
  %1168 = vmatpush1.bf16.msra.mxu0 %v544
  %1169 = vmatprep.subr.bf16.mxu0 0
  %1170 = vmatpush1.bf16.msra.mxu0 %v545
  %1171 = vmatprep.subr.bf16.mxu0 0
  %1172 = vmatpush1.bf16.msra.mxu0 %v546
  %1173 = vmatprep.subr.bf16.mxu0 0
  %1174 = vmatpush1.bf16.msra.mxu0 %v547
  %1175 = vmatprep.subr.bf16.mxu0 0
  %1176 = vmatpush1.bf16.msra.mxu0 %v548
  %1177 = vmatprep.subr.bf16.mxu0 0
  %1178 = vmatpush1.bf16.msra.mxu0 %v549
  %1179 = vmatprep.subr.bf16.mxu0 0
  %1180 = vmatpush1.bf16.msra.mxu0 %v550
  %1181 = vmatprep.subr.bf16.mxu0 0
  %1182 = vmatpush1.bf16.msra.mxu0 %v551
  %1183 = vmatprep.subr.bf16.mxu0 0
  %1184 = vmatpush1.bf16.msra.mxu0 %v552
  %1185 = vmatprep.subr.bf16.mxu0 0
  %1186 = vmatpush1.bf16.msra.mxu0 %v553
  %1187 = vmatprep.subr.bf16.mxu0 0
  %1188 = vmatpush1.bf16.msra.mxu0 %v554
  %1189 = vmatprep.subr.bf16.mxu0 0
  %1190 = vmatpush1.bf16.msra.mxu0 %v555
  %1191 = vmatprep.subr.bf16.mxu0 0
  %1192 = vmatpush1.bf16.msra.mxu0 %v556
  %1193 = vmatprep.subr.bf16.mxu0 0
  %1194 = vmatpush1.bf16.msra.mxu0 %v557
  %1195 = vmatprep.mubr.bf16.mxu0 %v1122
  %1196 = vmatmul.mubr.bf16.gmra.mrb[0].mxu0 %v1121
  %v1197 = vpop.f32.mrb[0].mxu0
  %v1198 = vadd.f32 %v1158, %v1197
  %v1199 = vpop.f32.mrb[0].mxu0
  %v1200 = vpop.f32.mrb[0].mxu0
  %v1201 = vpop.f32.mrb[0].mxu0
  %1202 = vdwg.mxu0
  %1204 = vrot.lane.b32.xlu0 %v1198, 48
  %v1205 = vpop.permute.xlu0 %1204
  %vm1207 = vcmask 517504
  %1208 = vst.msk [vmem:[%s5] sm:$0x3] %vm1207, %v1205
  %s1209 = scalar_lea.vmem %s0, 4
  %v1210 = vld [vmem:[%s1209] ss:$8 sm:$0x3]
  %v1211 = vpack.c.bf16 %v1210, %v1210
  %1212 = vmatprep.subr.bf16.mxu0 %v239
  %1213 = vmatpush1.bf16.msra.mxu0 %v238
  %1214 = vmatprep.subr.bf16.mxu0 %v243
  %1215 = vmatpush1.bf16.msra.mxu0 %v242
  %1216 = vmatprep.subr.bf16.mxu0 %v247
  %1217 = vmatpush1.bf16.msra.mxu0 %v246
  %1218 = vmatprep.subr.bf16.mxu0 %v251
  %1219 = vmatpush1.bf16.msra.mxu0 %v250
  %1220 = vmatprep.subr.bf16.mxu0 %v255
  %1221 = vmatpush1.bf16.msra.mxu0 %v254
  %1222 = vmatprep.subr.bf16.mxu0 %v259
  %1223 = vmatpush1.bf16.msra.mxu0 %v258
  %1224 = vmatprep.subr.bf16.mxu0 %v263
  %1225 = vmatpush1.bf16.msra.mxu0 %v262
  %1226 = vmatprep.subr.bf16.mxu0 %v267
  %1227 = vmatpush1.bf16.msra.mxu0 %v266
  %1228 = vmatprep.subr.bf16.mxu0 0
  %1229 = vmatpush1.bf16.msra.mxu0 0
  %1230 = vmatprep.subr.bf16.mxu0 0
  %1231 = vmatpush1.bf16.msra.mxu0 0
  %1232 = vmatprep.subr.bf16.mxu0 0
  %1233 = vmatpush1.bf16.msra.mxu0 0
  %1234 = vmatprep.subr.bf16.mxu0 0
  %1235 = vmatpush1.bf16.msra.mxu0 0
  %1236 = vmatprep.subr.bf16.mxu0 0
  %1237 = vmatpush1.bf16.msra.mxu0 0
  %1238 = vmatprep.subr.bf16.mxu0 0
  %1239 = vmatpush1.bf16.msra.mxu0 0
  %1240 = vmatprep.subr.bf16.mxu0 0
  %1241 = vmatpush1.bf16.msra.mxu0 0
  %1242 = vmatprep.subr.bf16.mxu0 0
  %1243 = vmatpush1.bf16.msra.mxu0 0
  %1244 = vmatprep.mubr.bf16.mxu0 0
  %1245 = vmatmul.mubr.bf16.gmra.mrb[0].mxu0 %v1211
  %v1246 = vpop.f32.mrb[0].mxu0
  %v1247 = vadd.f32 %v125, %v1246
  %v1248 = vpop.f32.mrb[0].mxu0
  %v1249 = vadd.f32 %v129, %v1248
  %v1250 = vpop.f32.mrb[0].mxu0
  %v1251 = vpop.f32.mrb[0].mxu0
  %1252 = vdwg.mxu0
  %1253 = vmatprep.subr.bf16.mxu0 %v241
  %1254 = vmatpush1.bf16.msra.mxu0 %v240
  %1255 = vmatprep.subr.bf16.mxu0 %v245
  %1256 = vmatpush1.bf16.msra.mxu0 %v244
  %1257 = vmatprep.subr.bf16.mxu0 %v249
  %1258 = vmatpush1.bf16.msra.mxu0 %v248
  %1259 = vmatprep.subr.bf16.mxu0 %v253
  %1260 = vmatpush1.bf16.msra.mxu0 %v252
  %1261 = vmatprep.subr.bf16.mxu0 %v257
  %1262 = vmatpush1.bf16.msra.mxu0 %v256
  %1263 = vmatprep.subr.bf16.mxu0 %v261
  %1264 = vmatpush1.bf16.msra.mxu0 %v260
  %1265 = vmatprep.subr.bf16.mxu0 %v265
  %1266 = vmatpush1.bf16.msra.mxu0 %v264
  %1267 = vmatprep.subr.bf16.mxu0 %v269
  %1268 = vmatpush1.bf16.msra.mxu0 %v268
  %1269 = vmatprep.subr.bf16.mxu0 0
  %1270 = vmatpush1.bf16.msra.mxu0 0
  %1271 = vmatprep.subr.bf16.mxu0 0
  %1272 = vmatpush1.bf16.msra.mxu0 0
  %1273 = vmatprep.subr.bf16.mxu0 0
  %1274 = vmatpush1.bf16.msra.mxu0 0
  %1275 = vmatprep.subr.bf16.mxu0 0
  %1276 = vmatpush1.bf16.msra.mxu0 0
  %1277 = vmatprep.subr.bf16.mxu0 0
  %1278 = vmatpush1.bf16.msra.mxu0 0
  %1279 = vmatprep.subr.bf16.mxu0 0
  %1280 = vmatpush1.bf16.msra.mxu0 0
  %1281 = vmatprep.subr.bf16.mxu0 0
  %1282 = vmatpush1.bf16.msra.mxu0 0
  %1283 = vmatprep.subr.bf16.mxu0 0
  %1284 = vmatpush1.bf16.msra.mxu0 0
  %1285 = vmatprep.mubr.bf16.mxu0 0
  %1286 = vmatmul.mubr.bf16.gmra.mrb[0].mxu0 %v1211
  %v1287 = vpop.f32.mrb[0].mxu0
  %v1288 = vadd.f32 %v133, %v1287
  %v1289 = vpop.f32.mrb[0].mxu0
  %v1290 = vadd.f32 %v137, %v1289
  %v1291 = vpop.f32.mrb[0].mxu0
  %v1292 = vpop.f32.mrb[0].mxu0
  %1293 = vdwg.mxu0
  %v1294 = vmax.f32 %v1247, 0.0
  %v1295 = vmax.f32 %v1249, 0.0
  %v1296 = vmax.f32 %v1288, 0.0
  %v1297 = vmax.f32 %v1290, 0.0
  %v1298 = vpack.c.bf16 %v1294, %v1294
  %v1299 = vpack.c.bf16 %v1295, %v1295
  %v1300 = vpack.c.bf16 %v1296, %v1296
  %v1301 = vpack.c.bf16 %v1297, %v1297
  %1302 = vmatprep.subr.bf16.mxu0 0
  %1303 = vmatpush1.bf16.msra.mxu0 %v526
  %1304 = vmatprep.subr.bf16.mxu0 0
  %1305 = vmatpush1.bf16.msra.mxu0 %v527
  %1306 = vmatprep.subr.bf16.mxu0 0
  %1307 = vmatpush1.bf16.msra.mxu0 %v528
  %1308 = vmatprep.subr.bf16.mxu0 0
  %1309 = vmatpush1.bf16.msra.mxu0 %v529
  %1310 = vmatprep.subr.bf16.mxu0 0
  %1311 = vmatpush1.bf16.msra.mxu0 %v530
  %1312 = vmatprep.subr.bf16.mxu0 0
  %1313 = vmatpush1.bf16.msra.mxu0 %v531
  %1314 = vmatprep.subr.bf16.mxu0 0
  %1315 = vmatpush1.bf16.msra.mxu0 %v532
  %1316 = vmatprep.subr.bf16.mxu0 0
  %1317 = vmatpush1.bf16.msra.mxu0 %v533
  %1318 = vmatprep.subr.bf16.mxu0 0
  %1319 = vmatpush1.bf16.msra.mxu0 %v534
  %1320 = vmatprep.subr.bf16.mxu0 0
  %1321 = vmatpush1.bf16.msra.mxu0 %v535
  %1322 = vmatprep.subr.bf16.mxu0 0
  %1323 = vmatpush1.bf16.msra.mxu0 %v536
  %1324 = vmatprep.subr.bf16.mxu0 0
  %1325 = vmatpush1.bf16.msra.mxu0 %v537
  %1326 = vmatprep.subr.bf16.mxu0 0
  %1327 = vmatpush1.bf16.msra.mxu0 %v538
  %1328 = vmatprep.subr.bf16.mxu0 0
  %1329 = vmatpush1.bf16.msra.mxu0 %v539
  %1330 = vmatprep.subr.bf16.mxu0 0
  %1331 = vmatpush1.bf16.msra.mxu0 %v540
  %1332 = vmatprep.subr.bf16.mxu0 0
  %1333 = vmatpush1.bf16.msra.mxu0 %v541
  %1334 = vmatprep.mubr.bf16.mxu0 %v1299
  %1335 = vmatmul.mubr.bf16.gmra.mrb[0].mxu0 %v1298
  %v1336 = vpop.f32.mrb[0].mxu0
  %v1337 = vadd.f32 %v396, %v1336
  %v1338 = vpop.f32.mrb[0].mxu0
  %v1339 = vpop.f32.mrb[0].mxu0
  %v1340 = vpop.f32.mrb[0].mxu0
  %1341 = vdwg.mxu0
  %1342 = vmatprep.subr.bf16.mxu0 0
  %1343 = vmatpush1.bf16.msra.mxu0 %v542
  %1344 = vmatprep.subr.bf16.mxu0 0
  %1345 = vmatpush1.bf16.msra.mxu0 %v543
  %1346 = vmatprep.subr.bf16.mxu0 0
  %1347 = vmatpush1.bf16.msra.mxu0 %v544
  %1348 = vmatprep.subr.bf16.mxu0 0
  %1349 = vmatpush1.bf16.msra.mxu0 %v545
  %1350 = vmatprep.subr.bf16.mxu0 0
  %1351 = vmatpush1.bf16.msra.mxu0 %v546
  %1352 = vmatprep.subr.bf16.mxu0 0
  %1353 = vmatpush1.bf16.msra.mxu0 %v547
  %1354 = vmatprep.subr.bf16.mxu0 0
  %1355 = vmatpush1.bf16.msra.mxu0 %v548
  %1356 = vmatprep.subr.bf16.mxu0 0
  %1357 = vmatpush1.bf16.msra.mxu0 %v549
  %1358 = vmatprep.subr.bf16.mxu0 0
  %1359 = vmatpush1.bf16.msra.mxu0 %v550
  %1360 = vmatprep.subr.bf16.mxu0 0
  %1361 = vmatpush1.bf16.msra.mxu0 %v551
  %1362 = vmatprep.subr.bf16.mxu0 0
  %1363 = vmatpush1.bf16.msra.mxu0 %v552
  %1364 = vmatprep.subr.bf16.mxu0 0
  %1365 = vmatpush1.bf16.msra.mxu0 %v553
  %1366 = vmatprep.subr.bf16.mxu0 0
  %1367 = vmatpush1.bf16.msra.mxu0 %v554
  %1368 = vmatprep.subr.bf16.mxu0 0
  %1369 = vmatpush1.bf16.msra.mxu0 %v555
  %1370 = vmatprep.subr.bf16.mxu0 0
  %1371 = vmatpush1.bf16.msra.mxu0 %v556
  %1372 = vmatprep.subr.bf16.mxu0 0
  %1373 = vmatpush1.bf16.msra.mxu0 %v557
  %1374 = vmatprep.mubr.bf16.mxu0 %v1301
  %1375 = vmatmul.mubr.bf16.gmra.mrb[0].mxu0 %v1300
  %v1376 = vpop.f32.mrb[0].mxu0
  %v1377 = vadd.f32 %v1337, %v1376
  %v1378 = vpop.f32.mrb[0].mxu0
  %v1379 = vpop.f32.mrb[0].mxu0
  %v1380 = vpop.f32.mrb[0].mxu0
  %1381 = vdwg.mxu0
  %1383 = vrot.lane.b32.xlu0 %v1377, 64
  %v1384 = vpop.permute.xlu0 %1383
  %vm1386 = vcmask 648704
  %1387 = vst.msk [vmem:[%s5] sm:$0x3] %vm1386, %v1384
  %s1388 = scalar_lea.vmem %s0, 5
  %v1389 = vld [vmem:[%s1388] ss:$8 sm:$0x3]
  %v1390 = vpack.c.bf16 %v1389, %v1389
  %1391 = vmatprep.subr.bf16.mxu0 %v239
  %1392 = vmatpush1.bf16.msra.mxu0 %v238
  %1393 = vmatprep.subr.bf16.mxu0 %v243
  %1394 = vmatpush1.bf16.msra.mxu0 %v242
  %1395 = vmatprep.subr.bf16.mxu0 %v247
  %1396 = vmatpush1.bf16.msra.mxu0 %v246
  %1397 = vmatprep.subr.bf16.mxu0 %v251
  %1398 = vmatpush1.bf16.msra.mxu0 %v250
  %1399 = vmatprep.subr.bf16.mxu0 %v255
  %1400 = vmatpush1.bf16.msra.mxu0 %v254
  %1401 = vmatprep.subr.bf16.mxu0 %v259
  %1402 = vmatpush1.bf16.msra.mxu0 %v258
  %1403 = vmatprep.subr.bf16.mxu0 %v263
  %1404 = vmatpush1.bf16.msra.mxu0 %v262
  %1405 = vmatprep.subr.bf16.mxu0 %v267
  %1406 = vmatpush1.bf16.msra.mxu0 %v266
  %1407 = vmatprep.subr.bf16.mxu0 0
  %1408 = vmatpush1.bf16.msra.mxu0 0
  %1409 = vmatprep.subr.bf16.mxu0 0
  %1410 = vmatpush1.bf16.msra.mxu0 0
  %1411 = vmatprep.subr.bf16.mxu0 0
  %1412 = vmatpush1.bf16.msra.mxu0 0
  %1413 = vmatprep.subr.bf16.mxu0 0
  %1414 = vmatpush1.bf16.msra.mxu0 0
  %1415 = vmatprep.subr.bf16.mxu0 0
  %1416 = vmatpush1.bf16.msra.mxu0 0
  %1417 = vmatprep.subr.bf16.mxu0 0
  %1418 = vmatpush1.bf16.msra.mxu0 0
  %1419 = vmatprep.subr.bf16.mxu0 0
  %1420 = vmatpush1.bf16.msra.mxu0 0
  %1421 = vmatprep.subr.bf16.mxu0 0
  %1422 = vmatpush1.bf16.msra.mxu0 0
  %1423 = vmatprep.mubr.bf16.mxu0 0
  %1424 = vmatmul.mubr.bf16.gmra.mrb[0].mxu0 %v1390
  %v1425 = vpop.f32.mrb[0].mxu0
  %v1426 = vadd.f32 %v125, %v1425
  %v1427 = vpop.f32.mrb[0].mxu0
  %v1428 = vadd.f32 %v129, %v1427
  %v1429 = vpop.f32.mrb[0].mxu0
  %v1430 = vpop.f32.mrb[0].mxu0
  %1431 = vdwg.mxu0
  %1432 = vmatprep.subr.bf16.mxu0 %v241
  %1433 = vmatpush1.bf16.msra.mxu0 %v240
  %1434 = vmatprep.subr.bf16.mxu0 %v245
  %1435 = vmatpush1.bf16.msra.mxu0 %v244
  %1436 = vmatprep.subr.bf16.mxu0 %v249
  %1437 = vmatpush1.bf16.msra.mxu0 %v248
  %1438 = vmatprep.subr.bf16.mxu0 %v253
  %1439 = vmatpush1.bf16.msra.mxu0 %v252
  %1440 = vmatprep.subr.bf16.mxu0 %v257
  %1441 = vmatpush1.bf16.msra.mxu0 %v256
  %1442 = vmatprep.subr.bf16.mxu0 %v261
  %1443 = vmatpush1.bf16.msra.mxu0 %v260
  %1444 = vmatprep.subr.bf16.mxu0 %v265
  %1445 = vmatpush1.bf16.msra.mxu0 %v264
  %1446 = vmatprep.subr.bf16.mxu0 %v269
  %1447 = vmatpush1.bf16.msra.mxu0 %v268
  %1448 = vmatprep.subr.bf16.mxu0 0
  %1449 = vmatpush1.bf16.msra.mxu0 0
  %1450 = vmatprep.subr.bf16.mxu0 0
  %1451 = vmatpush1.bf16.msra.mxu0 0
  %1452 = vmatprep.subr.bf16.mxu0 0
  %1453 = vmatpush1.bf16.msra.mxu0 0
  %1454 = vmatprep.subr.bf16.mxu0 0
  %1455 = vmatpush1.bf16.msra.mxu0 0
  %1456 = vmatprep.subr.bf16.mxu0 0
  %1457 = vmatpush1.bf16.msra.mxu0 0
  %1458 = vmatprep.subr.bf16.mxu0 0
  %1459 = vmatpush1.bf16.msra.mxu0 0
  %1460 = vmatprep.subr.bf16.mxu0 0
  %1461 = vmatpush1.bf16.msra.mxu0 0
  %1462 = vmatprep.subr.bf16.mxu0 0
  %1463 = vmatpush1.bf16.msra.mxu0 0
  %1464 = vmatprep.mubr.bf16.mxu0 0
  %1465 = vmatmul.mubr.bf16.gmra.mrb[0].mxu0 %v1390
  %v1466 = vpop.f32.mrb[0].mxu0
  %v1467 = vadd.f32 %v133, %v1466
  %v1468 = vpop.f32.mrb[0].mxu0
  %v1469 = vadd.f32 %v137, %v1468
  %v1470 = vpop.f32.mrb[0].mxu0
  %v1471 = vpop.f32.mrb[0].mxu0
  %1472 = vdwg.mxu0
  %v1473 = vmax.f32 %v1426, 0.0
  %v1474 = vmax.f32 %v1428, 0.0
  %v1475 = vmax.f32 %v1467, 0.0
  %v1476 = vmax.f32 %v1469, 0.0
  %v1477 = vpack.c.bf16 %v1473, %v1473
  %v1478 = vpack.c.bf16 %v1474, %v1474
  %v1479 = vpack.c.bf16 %v1475, %v1475
  %v1480 = vpack.c.bf16 %v1476, %v1476
  %1481 = vmatprep.subr.bf16.mxu0 0
  %1482 = vmatpush1.bf16.msra.mxu0 %v526
  %1483 = vmatprep.subr.bf16.mxu0 0
  %1484 = vmatpush1.bf16.msra.mxu0 %v527
  %1485 = vmatprep.subr.bf16.mxu0 0
  %1486 = vmatpush1.bf16.msra.mxu0 %v528
  %1487 = vmatprep.subr.bf16.mxu0 0
  %1488 = vmatpush1.bf16.msra.mxu0 %v529
  %1489 = vmatprep.subr.bf16.mxu0 0
  %1490 = vmatpush1.bf16.msra.mxu0 %v530
  %1491 = vmatprep.subr.bf16.mxu0 0
  %1492 = vmatpush1.bf16.msra.mxu0 %v531
  %1493 = vmatprep.subr.bf16.mxu0 0
  %1494 = vmatpush1.bf16.msra.mxu0 %v532
  %1495 = vmatprep.subr.bf16.mxu0 0
  %1496 = vmatpush1.bf16.msra.mxu0 %v533
  %1497 = vmatprep.subr.bf16.mxu0 0
  %1498 = vmatpush1.bf16.msra.mxu0 %v534
  %1499 = vmatprep.subr.bf16.mxu0 0
  %1500 = vmatpush1.bf16.msra.mxu0 %v535
  %1501 = vmatprep.subr.bf16.mxu0 0
  %1502 = vmatpush1.bf16.msra.mxu0 %v536
  %1503 = vmatprep.subr.bf16.mxu0 0
  %1504 = vmatpush1.bf16.msra.mxu0 %v537
  %1505 = vmatprep.subr.bf16.mxu0 0
  %1506 = vmatpush1.bf16.msra.mxu0 %v538
  %1507 = vmatprep.subr.bf16.mxu0 0
  %1508 = vmatpush1.bf16.msra.mxu0 %v539
  %1509 = vmatprep.subr.bf16.mxu0 0
  %1510 = vmatpush1.bf16.msra.mxu0 %v540
  %1511 = vmatprep.subr.bf16.mxu0 0
  %1512 = vmatpush1.bf16.msra.mxu0 %v541
  %1513 = vmatprep.mubr.bf16.mxu0 %v1478
  %1514 = vmatmul.mubr.bf16.gmra.mrb[0].mxu0 %v1477
  %v1515 = vpop.f32.mrb[0].mxu0
  %v1516 = vadd.f32 %v396, %v1515
  %v1517 = vpop.f32.mrb[0].mxu0
  %v1518 = vpop.f32.mrb[0].mxu0
  %v1519 = vpop.f32.mrb[0].mxu0
  %1520 = vdwg.mxu0
  %1521 = vmatprep.subr.bf16.mxu0 0
  %1522 = vmatpush1.bf16.msra.mxu0 %v542
  %1523 = vmatprep.subr.bf16.mxu0 0
  %1524 = vmatpush1.bf16.msra.mxu0 %v543
  %1525 = vmatprep.subr.bf16.mxu0 0
  %1526 = vmatpush1.bf16.msra.mxu0 %v544
  %1527 = vmatprep.subr.bf16.mxu0 0
  %1528 = vmatpush1.bf16.msra.mxu0 %v545
  %1529 = vmatprep.subr.bf16.mxu0 0
  %1530 = vmatpush1.bf16.msra.mxu0 %v546
  %1531 = vmatprep.subr.bf16.mxu0 0
  %1532 = vmatpush1.bf16.msra.mxu0 %v547
  %1533 = vmatprep.subr.bf16.mxu0 0
  %1534 = vmatpush1.bf16.msra.mxu0 %v548
  %1535 = vmatprep.subr.bf16.mxu0 0
  %1536 = vmatpush1.bf16.msra.mxu0 %v549
  %1537 = vmatprep.subr.bf16.mxu0 0
  %1538 = vmatpush1.bf16.msra.mxu0 %v550
  %1539 = vmatprep.subr.bf16.mxu0 0
  %1540 = vmatpush1.bf16.msra.mxu0 %v551
  %1541 = vmatprep.subr.bf16.mxu0 0
  %1542 = vmatpush1.bf16.msra.mxu0 %v552
  %1543 = vmatprep.subr.bf16.mxu0 0
  %1544 = vmatpush1.bf16.msra.mxu0 %v553
  %1545 = vmatprep.subr.bf16.mxu0 0
  %1546 = vmatpush1.bf16.msra.mxu0 %v554
  %1547 = vmatprep.subr.bf16.mxu0 0
  %1548 = vmatpush1.bf16.msra.mxu0 %v555
  %1549 = vmatprep.subr.bf16.mxu0 0
  %1550 = vmatpush1.bf16.msra.mxu0 %v556
  %1551 = vmatprep.subr.bf16.mxu0 0
  %1552 = vmatpush1.bf16.msra.mxu0 %v557
  %1553 = vmatprep.mubr.bf16.mxu0 %v1480
  %1554 = vmatmul.mubr.bf16.gmra.mrb[0].mxu0 %v1479
  %v1555 = vpop.f32.mrb[0].mxu0
  %v1556 = vadd.f32 %v1516, %v1555
  %v1557 = vpop.f32.mrb[0].mxu0
  %v1558 = vpop.f32.mrb[0].mxu0
  %v1559 = vpop.f32.mrb[0].mxu0
  %1560 = vdwg.mxu0
  %1562 = vrot.lane.b32.xlu0 %v1556, 80
  %v1563 = vpop.permute.xlu0 %1562
  %vm1565 = vcmask 779904
  %1566 = vst.msk [vmem:[%s5] sm:$0x3] %vm1565, %v1563
  %s1567 = scalar_lea.vmem %s0, 6
  %v1568 = vld [vmem:[%s1567] ss:$8 sm:$0x3]
  %v1569 = vpack.c.bf16 %v1568, %v1568
  %1570 = vmatprep.subr.bf16.mxu0 %v239
  %1571 = vmatpush1.bf16.msra.mxu0 %v238
  %1572 = vmatprep.subr.bf16.mxu0 %v243
  %1573 = vmatpush1.bf16.msra.mxu0 %v242
  %1574 = vmatprep.subr.bf16.mxu0 %v247
  %1575 = vmatpush1.bf16.msra.mxu0 %v246
  %1576 = vmatprep.subr.bf16.mxu0 %v251
  %1577 = vmatpush1.bf16.msra.mxu0 %v250
  %1578 = vmatprep.subr.bf16.mxu0 %v255
  %1579 = vmatpush1.bf16.msra.mxu0 %v254
  %1580 = vmatprep.subr.bf16.mxu0 %v259
  %1581 = vmatpush1.bf16.msra.mxu0 %v258
  %1582 = vmatprep.subr.bf16.mxu0 %v263
  %1583 = vmatpush1.bf16.msra.mxu0 %v262
  %1584 = vmatprep.subr.bf16.mxu0 %v267
  %1585 = vmatpush1.bf16.msra.mxu0 %v266
  %1586 = vmatprep.subr.bf16.mxu0 0
  %1587 = vmatpush1.bf16.msra.mxu0 0
  %1588 = vmatprep.subr.bf16.mxu0 0
  %1589 = vmatpush1.bf16.msra.mxu0 0
  %1590 = vmatprep.subr.bf16.mxu0 0
  %1591 = vmatpush1.bf16.msra.mxu0 0
  %1592 = vmatprep.subr.bf16.mxu0 0
  %1593 = vmatpush1.bf16.msra.mxu0 0
  %1594 = vmatprep.subr.bf16.mxu0 0
  %1595 = vmatpush1.bf16.msra.mxu0 0
  %1596 = vmatprep.subr.bf16.mxu0 0
  %1597 = vmatpush1.bf16.msra.mxu0 0
  %1598 = vmatprep.subr.bf16.mxu0 0
  %1599 = vmatpush1.bf16.msra.mxu0 0
  %1600 = vmatprep.subr.bf16.mxu0 0
  %1601 = vmatpush1.bf16.msra.mxu0 0
  %1602 = vmatprep.mubr.bf16.mxu0 0
  %1603 = vmatmul.mubr.bf16.gmra.mrb[0].mxu0 %v1569
  %v1604 = vpop.f32.mrb[0].mxu0
  %v1605 = vadd.f32 %v125, %v1604
  %v1606 = vpop.f32.mrb[0].mxu0
  %v1607 = vadd.f32 %v129, %v1606
  %v1608 = vpop.f32.mrb[0].mxu0
  %v1609 = vpop.f32.mrb[0].mxu0
  %1610 = vdwg.mxu0
  %1611 = vmatprep.subr.bf16.mxu0 %v241
  %1612 = vmatpush1.bf16.msra.mxu0 %v240
  %1613 = vmatprep.subr.bf16.mxu0 %v245
  %1614 = vmatpush1.bf16.msra.mxu0 %v244
  %1615 = vmatprep.subr.bf16.mxu0 %v249
  %1616 = vmatpush1.bf16.msra.mxu0 %v248
  %1617 = vmatprep.subr.bf16.mxu0 %v253
  %1618 = vmatpush1.bf16.msra.mxu0 %v252
  %1619 = vmatprep.subr.bf16.mxu0 %v257
  %1620 = vmatpush1.bf16.msra.mxu0 %v256
  %1621 = vmatprep.subr.bf16.mxu0 %v261
  %1622 = vmatpush1.bf16.msra.mxu0 %v260
  %1623 = vmatprep.subr.bf16.mxu0 %v265
  %1624 = vmatpush1.bf16.msra.mxu0 %v264
  %1625 = vmatprep.subr.bf16.mxu0 %v269
  %1626 = vmatpush1.bf16.msra.mxu0 %v268
  %1627 = vmatprep.subr.bf16.mxu0 0
  %1628 = vmatpush1.bf16.msra.mxu0 0
  %1629 = vmatprep.subr.bf16.mxu0 0
  %1630 = vmatpush1.bf16.msra.mxu0 0
  %1631 = vmatprep.subr.bf16.mxu0 0
  %1632 = vmatpush1.bf16.msra.mxu0 0
  %1633 = vmatprep.subr.bf16.mxu0 0
  %1634 = vmatpush1.bf16.msra.mxu0 0
  %1635 = vmatprep.subr.bf16.mxu0 0
  %1636 = vmatpush1.bf16.msra.mxu0 0
  %1637 = vmatprep.subr.bf16.mxu0 0
  %1638 = vmatpush1.bf16.msra.mxu0 0
  %1639 = vmatprep.subr.bf16.mxu0 0
  %1640 = vmatpush1.bf16.msra.mxu0 0
  %1641 = vmatprep.subr.bf16.mxu0 0
  %1642 = vmatpush1.bf16.msra.mxu0 0
  %1643 = vmatprep.mubr.bf16.mxu0 0
  %1644 = vmatmul.mubr.bf16.gmra.mrb[0].mxu0 %v1569
  %v1645 = vpop.f32.mrb[0].mxu0
  %v1646 = vadd.f32 %v133, %v1645
  %v1647 = vpop.f32.mrb[0].mxu0
  %v1648 = vadd.f32 %v137, %v1647
  %v1649 = vpop.f32.mrb[0].mxu0
  %v1650 = vpop.f32.mrb[0].mxu0
  %1651 = vdwg.mxu0
  %v1652 = vmax.f32 %v1605, 0.0
  %v1653 = vmax.f32 %v1607, 0.0
  %v1654 = vmax.f32 %v1646, 0.0
  %v1655 = vmax.f32 %v1648, 0.0
  %v1656 = vpack.c.bf16 %v1652, %v1652
  %v1657 = vpack.c.bf16 %v1653, %v1653
  %v1658 = vpack.c.bf16 %v1654, %v1654
  %v1659 = vpack.c.bf16 %v1655, %v1655
  %1660 = vmatprep.subr.bf16.mxu0 0
  %1661 = vmatpush1.bf16.msra.mxu0 %v526
  %1662 = vmatprep.subr.bf16.mxu0 0
  %1663 = vmatpush1.bf16.msra.mxu0 %v527
  %1664 = vmatprep.subr.bf16.mxu0 0
  %1665 = vmatpush1.bf16.msra.mxu0 %v528
  %1666 = vmatprep.subr.bf16.mxu0 0
  %1667 = vmatpush1.bf16.msra.mxu0 %v529
  %1668 = vmatprep.subr.bf16.mxu0 0
  %1669 = vmatpush1.bf16.msra.mxu0 %v530
  %1670 = vmatprep.subr.bf16.mxu0 0
  %1671 = vmatpush1.bf16.msra.mxu0 %v531
  %1672 = vmatprep.subr.bf16.mxu0 0
  %1673 = vmatpush1.bf16.msra.mxu0 %v532
  %1674 = vmatprep.subr.bf16.mxu0 0
  %1675 = vmatpush1.bf16.msra.mxu0 %v533
  %1676 = vmatprep.subr.bf16.mxu0 0
  %1677 = vmatpush1.bf16.msra.mxu0 %v534
  %1678 = vmatprep.subr.bf16.mxu0 0
  %1679 = vmatpush1.bf16.msra.mxu0 %v535
  %1680 = vmatprep.subr.bf16.mxu0 0
  %1681 = vmatpush1.bf16.msra.mxu0 %v536
  %1682 = vmatprep.subr.bf16.mxu0 0
  %1683 = vmatpush1.bf16.msra.mxu0 %v537
  %1684 = vmatprep.subr.bf16.mxu0 0
  %1685 = vmatpush1.bf16.msra.mxu0 %v538
  %1686 = vmatprep.subr.bf16.mxu0 0
  %1687 = vmatpush1.bf16.msra.mxu0 %v539
  %1688 = vmatprep.subr.bf16.mxu0 0
  %1689 = vmatpush1.bf16.msra.mxu0 %v540
  %1690 = vmatprep.subr.bf16.mxu0 0
  %1691 = vmatpush1.bf16.msra.mxu0 %v541
  %1692 = vmatprep.mubr.bf16.mxu0 %v1657
  %1693 = vmatmul.mubr.bf16.gmra.mrb[0].mxu0 %v1656
  %v1694 = vpop.f32.mrb[0].mxu0
  %v1695 = vadd.f32 %v396, %v1694
  %v1696 = vpop.f32.mrb[0].mxu0
  %v1697 = vpop.f32.mrb[0].mxu0
  %v1698 = vpop.f32.mrb[0].mxu0
  %1699 = vdwg.mxu0
  %1700 = vmatprep.subr.bf16.mxu0 0
  %1701 = vmatpush1.bf16.msra.mxu0 %v542
  %1702 = vmatprep.subr.bf16.mxu0 0
  %1703 = vmatpush1.bf16.msra.mxu0 %v543
  %1704 = vmatprep.subr.bf16.mxu0 0
  %1705 = vmatpush1.bf16.msra.mxu0 %v544
  %1706 = vmatprep.subr.bf16.mxu0 0
  %1707 = vmatpush1.bf16.msra.mxu0 %v545
  %1708 = vmatprep.subr.bf16.mxu0 0
  %1709 = vmatpush1.bf16.msra.mxu0 %v546
  %1710 = vmatprep.subr.bf16.mxu0 0
  %1711 = vmatpush1.bf16.msra.mxu0 %v547
  %1712 = vmatprep.subr.bf16.mxu0 0
  %1713 = vmatpush1.bf16.msra.mxu0 %v548
  %1714 = vmatprep.subr.bf16.mxu0 0
  %1715 = vmatpush1.bf16.msra.mxu0 %v549
  %1716 = vmatprep.subr.bf16.mxu0 0
  %1717 = vmatpush1.bf16.msra.mxu0 %v550
  %1718 = vmatprep.subr.bf16.mxu0 0
  %1719 = vmatpush1.bf16.msra.mxu0 %v551
  %1720 = vmatprep.subr.bf16.mxu0 0
  %1721 = vmatpush1.bf16.msra.mxu0 %v552
  %1722 = vmatprep.subr.bf16.mxu0 0
  %1723 = vmatpush1.bf16.msra.mxu0 %v553
  %1724 = vmatprep.subr.bf16.mxu0 0
  %1725 = vmatpush1.bf16.msra.mxu0 %v554
  %1726 = vmatprep.subr.bf16.mxu0 0
  %1727 = vmatpush1.bf16.msra.mxu0 %v555
  %1728 = vmatprep.subr.bf16.mxu0 0
  %1729 = vmatpush1.bf16.msra.mxu0 %v556
  %1730 = vmatprep.subr.bf16.mxu0 0
  %1731 = vmatpush1.bf16.msra.mxu0 %v557
  %1732 = vmatprep.mubr.bf16.mxu0 %v1659
  %1733 = vmatmul.mubr.bf16.gmra.mrb[0].mxu0 %v1658
  %v1734 = vpop.f32.mrb[0].mxu0
  %v1735 = vadd.f32 %v1695, %v1734
  %v1736 = vpop.f32.mrb[0].mxu0
  %v1737 = vpop.f32.mrb[0].mxu0
  %v1738 = vpop.f32.mrb[0].mxu0
  %1739 = vdwg.mxu0
  %1741 = vrot.lane.b32.xlu0 %v1735, 96
  %v1742 = vpop.permute.xlu0 %1741
  %vm1744 = vcmask 911104
  %1745 = vst.msk [vmem:[%s5] sm:$0x3] %vm1744, %v1742
  %s1746 = scalar_lea.vmem %s0, 7
  %v1747 = vld [vmem:[%s1746] ss:$8 sm:$0x3]
  %v1748 = vpack.c.bf16 %v1747, %v1747
  %1749 = vmatprep.subr.bf16.mxu0 %v239
  %1750 = vmatpush1.bf16.msra.mxu0 %v238
  %1751 = vmatprep.subr.bf16.mxu0 %v243
  %1752 = vmatpush1.bf16.msra.mxu0 %v242
  %1753 = vmatprep.subr.bf16.mxu0 %v247
  %1754 = vmatpush1.bf16.msra.mxu0 %v246
  %1755 = vmatprep.subr.bf16.mxu0 %v251
  %1756 = vmatpush1.bf16.msra.mxu0 %v250
  %1757 = vmatprep.subr.bf16.mxu0 %v255
  %1758 = vmatpush1.bf16.msra.mxu0 %v254
  %1759 = vmatprep.subr.bf16.mxu0 %v259
  %1760 = vmatpush1.bf16.msra.mxu0 %v258
  %1761 = vmatprep.subr.bf16.mxu0 %v263
  %1762 = vmatpush1.bf16.msra.mxu0 %v262
  %1763 = vmatprep.subr.bf16.mxu0 %v267
  %1764 = vmatpush1.bf16.msra.mxu0 %v266
  %1765 = vmatprep.subr.bf16.mxu0 0
  %1766 = vmatpush1.bf16.msra.mxu0 0
  %1767 = vmatprep.subr.bf16.mxu0 0
  %1768 = vmatpush1.bf16.msra.mxu0 0
  %1769 = vmatprep.subr.bf16.mxu0 0
  %1770 = vmatpush1.bf16.msra.mxu0 0
  %1771 = vmatprep.subr.bf16.mxu0 0
  %1772 = vmatpush1.bf16.msra.mxu0 0
  %1773 = vmatprep.subr.bf16.mxu0 0
  %1774 = vmatpush1.bf16.msra.mxu0 0
  %1775 = vmatprep.subr.bf16.mxu0 0
  %1776 = vmatpush1.bf16.msra.mxu0 0
  %1777 = vmatprep.subr.bf16.mxu0 0
  %1778 = vmatpush1.bf16.msra.mxu0 0
  %1779 = vmatprep.subr.bf16.mxu0 0
  %1780 = vmatpush1.bf16.msra.mxu0 0
  %1781 = vmatprep.mubr.bf16.mxu0 0
  %1782 = vmatmul.mubr.bf16.gmra.mrb[0].mxu0 %v1748
  %v1783 = vpop.f32.mrb[0].mxu0
  %v1784 = vadd.f32 %v125, %v1783
  %v1785 = vpop.f32.mrb[0].mxu0
  %v1786 = vadd.f32 %v129, %v1785
  %v1787 = vpop.f32.mrb[0].mxu0
  %v1788 = vpop.f32.mrb[0].mxu0
  %1789 = vdwg.mxu0
  %1790 = vmatprep.subr.bf16.mxu0 %v241
  %1791 = vmatpush1.bf16.msra.mxu0 %v240
  %1792 = vmatprep.subr.bf16.mxu0 %v245
  %1793 = vmatpush1.bf16.msra.mxu0 %v244
  %1794 = vmatprep.subr.bf16.mxu0 %v249
  %1795 = vmatpush1.bf16.msra.mxu0 %v248
  %1796 = vmatprep.subr.bf16.mxu0 %v253
  %1797 = vmatpush1.bf16.msra.mxu0 %v252
  %1798 = vmatprep.subr.bf16.mxu0 %v257
  %1799 = vmatpush1.bf16.msra.mxu0 %v256
  %1800 = vmatprep.subr.bf16.mxu0 %v261
  %1801 = vmatpush1.bf16.msra.mxu0 %v260
  %1802 = vmatprep.subr.bf16.mxu0 %v265
  %1803 = vmatpush1.bf16.msra.mxu0 %v264
  %1804 = vmatprep.subr.bf16.mxu0 %v269
  %1805 = vmatpush1.bf16.msra.mxu0 %v268
  %1806 = vmatprep.subr.bf16.mxu0 0
  %1807 = vmatpush1.bf16.msra.mxu0 0
  %1808 = vmatprep.subr.bf16.mxu0 0
  %1809 = vmatpush1.bf16.msra.mxu0 0
  %1810 = vmatprep.subr.bf16.mxu0 0
  %1811 = vmatpush1.bf16.msra.mxu0 0
  %1812 = vmatprep.subr.bf16.mxu0 0
  %1813 = vmatpush1.bf16.msra.mxu0 0
  %1814 = vmatprep.subr.bf16.mxu0 0
  %1815 = vmatpush1.bf16.msra.mxu0 0
  %1816 = vmatprep.subr.bf16.mxu0 0
  %1817 = vmatpush1.bf16.msra.mxu0 0
  %1818 = vmatprep.subr.bf16.mxu0 0
  %1819 = vmatpush1.bf16.msra.mxu0 0
  %1820 = vmatprep.subr.bf16.mxu0 0
  %1821 = vmatpush1.bf16.msra.mxu0 0
  %1822 = vmatprep.mubr.bf16.mxu0 0
  %1823 = vmatmul.mubr.bf16.gmra.mrb[0].mxu0 %v1748
  %v1824 = vpop.f32.mrb[0].mxu0
  %v1825 = vadd.f32 %v133, %v1824
  %v1826 = vpop.f32.mrb[0].mxu0
  %v1827 = vadd.f32 %v137, %v1826
  %v1828 = vpop.f32.mrb[0].mxu0
  %v1829 = vpop.f32.mrb[0].mxu0
  %1830 = vdwg.mxu0
  %v1831 = vmax.f32 %v1784, 0.0
  %v1832 = vmax.f32 %v1786, 0.0
  %v1833 = vmax.f32 %v1825, 0.0
  %v1834 = vmax.f32 %v1827, 0.0
  %v1835 = vpack.c.bf16 %v1831, %v1831
  %v1836 = vpack.c.bf16 %v1832, %v1832
  %v1837 = vpack.c.bf16 %v1833, %v1833
  %v1838 = vpack.c.bf16 %v1834, %v1834
  %1839 = vmatprep.subr.bf16.mxu0 0
  %1840 = vmatpush1.bf16.msra.mxu0 %v526
  %1841 = vmatprep.subr.bf16.mxu0 0
  %1842 = vmatpush1.bf16.msra.mxu0 %v527
  %1843 = vmatprep.subr.bf16.mxu0 0
  %1844 = vmatpush1.bf16.msra.mxu0 %v528
  %1845 = vmatprep.subr.bf16.mxu0 0
  %1846 = vmatpush1.bf16.msra.mxu0 %v529
  %1847 = vmatprep.subr.bf16.mxu0 0
  %1848 = vmatpush1.bf16.msra.mxu0 %v530
  %1849 = vmatprep.subr.bf16.mxu0 0
  %1850 = vmatpush1.bf16.msra.mxu0 %v531
  %1851 = vmatprep.subr.bf16.mxu0 0
  %1852 = vmatpush1.bf16.msra.mxu0 %v532
  %1853 = vmatprep.subr.bf16.mxu0 0
  %1854 = vmatpush1.bf16.msra.mxu0 %v533
  %1855 = vmatprep.subr.bf16.mxu0 0
  %1856 = vmatpush1.bf16.msra.mxu0 %v534
  %1857 = vmatprep.subr.bf16.mxu0 0
  %1858 = vmatpush1.bf16.msra.mxu0 %v535
  %1859 = vmatprep.subr.bf16.mxu0 0
  %1860 = vmatpush1.bf16.msra.mxu0 %v536
  %1861 = vmatprep.subr.bf16.mxu0 0
  %1862 = vmatpush1.bf16.msra.mxu0 %v537
  %1863 = vmatprep.subr.bf16.mxu0 0
  %1864 = vmatpush1.bf16.msra.mxu0 %v538
  %1865 = vmatprep.subr.bf16.mxu0 0
  %1866 = vmatpush1.bf16.msra.mxu0 %v539
  %1867 = vmatprep.subr.bf16.mxu0 0
  %1868 = vmatpush1.bf16.msra.mxu0 %v540
  %1869 = vmatprep.subr.bf16.mxu0 0
  %1870 = vmatpush1.bf16.msra.mxu0 %v541
  %1871 = vmatprep.mubr.bf16.mxu0 %v1836
  %1872 = vmatmul.mubr.bf16.gmra.mrb[0].mxu0 %v1835
  %v1873 = vpop.f32.mrb[0].mxu0
  %v1874 = vadd.f32 %v396, %v1873
  %v1875 = vpop.f32.mrb[0].mxu0
  %v1876 = vpop.f32.mrb[0].mxu0
  %v1877 = vpop.f32.mrb[0].mxu0
  %1878 = vdwg.mxu0
  %1879 = vmatprep.subr.bf16.mxu0 0
  %1880 = vmatpush1.bf16.msra.mxu0 %v542
  %1881 = vmatprep.subr.bf16.mxu0 0
  %1882 = vmatpush1.bf16.msra.mxu0 %v543
  %1883 = vmatprep.subr.bf16.mxu0 0
  %1884 = vmatpush1.bf16.msra.mxu0 %v544
  %1885 = vmatprep.subr.bf16.mxu0 0
  %1886 = vmatpush1.bf16.msra.mxu0 %v545
  %1887 = vmatprep.subr.bf16.mxu0 0
  %1888 = vmatpush1.bf16.msra.mxu0 %v546
  %1889 = vmatprep.subr.bf16.mxu0 0
  %1890 = vmatpush1.bf16.msra.mxu0 %v547
  %1891 = vmatprep.subr.bf16.mxu0 0
  %1892 = vmatpush1.bf16.msra.mxu0 %v548
  %1893 = vmatprep.subr.bf16.mxu0 0
  %1894 = vmatpush1.bf16.msra.mxu0 %v549
  %1895 = vmatprep.subr.bf16.mxu0 0
  %1896 = vmatpush1.bf16.msra.mxu0 %v550
  %1897 = vmatprep.subr.bf16.mxu0 0
  %1898 = vmatpush1.bf16.msra.mxu0 %v551
  %1899 = vmatprep.subr.bf16.mxu0 0
  %1900 = vmatpush1.bf16.msra.mxu0 %v552
  %1901 = vmatprep.subr.bf16.mxu0 0
  %1902 = vmatpush1.bf16.msra.mxu0 %v553
  %1903 = vmatprep.subr.bf16.mxu0 0
  %1904 = vmatpush1.bf16.msra.mxu0 %v554
  %1905 = vmatprep.subr.bf16.mxu0 0
  %1906 = vmatpush1.bf16.msra.mxu0 %v555
  %1907 = vmatprep.subr.bf16.mxu0 0
  %1908 = vmatpush1.bf16.msra.mxu0 %v556
  %1909 = vmatprep.subr.bf16.mxu0 0
  %1910 = vmatpush1.bf16.msra.mxu0 %v557
  %1911 = vmatprep.mubr.bf16.mxu0 %v1838
  %1912 = vmatmul.mubr.bf16.gmra.mrb[0].mxu0 %v1837
  %v1913 = vpop.f32.mrb[0].mxu0
  %v1914 = vadd.f32 %v1874, %v1913
  %v1915 = vpop.f32.mrb[0].mxu0
  %v1916 = vpop.f32.mrb[0].mxu0
  %v1917 = vpop.f32.mrb[0].mxu0
  %1918 = vdwg.mxu0
  %1920 = vrot.lane.b32.xlu0 %v1914, 112
  %v1921 = vpop.permute.xlu0 %1920
  %vm1923 = vcmask 1042304
  %1924 = vst.msk [vmem:[%s5] sm:$0x3] %vm1923, %v1921
  // Predicated region
  $region22: #{basic_conv3d_forward.1} parent=0 // pred_check
    _
  $region23: #{basic_conv3d_forward.1} parent=0 // pred_check_branch
    %1926 = sbr.rel (0) target = $region25
  $region24: #{basic_conv3d_forward.1} parent=0 // pred_region
    _
  $region25: #{basic_conv3d_forward.1} parent=0 // pred_fallthru
    _
  // Predicated region
  $region26: #{basic_conv3d_forward.1} parent=0 // pred_check
    _
  $region27: #{basic_conv3d_forward.1} parent=0 // pred_check_branch
    %1928 = sbr.rel (0) target = $region29
  $region28: #{basic_conv3d_forward.1} parent=0 // pred_region
    _
  $region29: #{basic_conv3d_forward.1} parent=0 // pred_fallthru
    _

</llo_original>
